<compile_context>
chip_gen: v6e
topology: v6e:2x2x1
jax: 0.10.0
libtpu: 0.0.40
codegen_flags: <defaults>
</compile_context>

<pallas_src>
import jax
import jax.numpy as jnp
from jax import lax
from jax.experimental import pallas as pl
from jax.experimental.pallas import tpu as pltpu

EPS = 1e-5  # torch.nn.InstanceNorm2d default


def _basic_block_kernel(x_ref, w_ref, gb_ref, o_ref, slab_ref):
    # x_ref   : (1, H, W, Cin)   compute dtype (bf16 by default)
    # w_ref   : (9*Cin, CT)      conv weights for this Cout tile, compute dtype
    # gb_ref  : (2, CT)          [gamma; beta] (f32), padded channels are zero
    # o_ref   : (1, H, W, Cs)    Cs == CT (lane-dense) or Cs == Cout < CT (unpadded)
    # slab_ref: (H*W, 9*Cin)     VMEM scratch, im2col slab cached across Cout tiles
    H, W, Cin = x_ref.shape[1], x_ref.shape[2], x_ref.shape[3]
    CT = w_ref.shape[1]
    Cs = o_ref.shape[3]
    HW = H * W

    # ---- build the im2col slab once per batch sample (inner grid axis is the Cout
    #      tile, marked "arbitrary"; x block & scratch stay resident across it) ----
    @pl.when(pl.program_id(1) == 0)
    def _():
        x = x_ref[0]                                              # (H, W, Cin)
        zc = jnp.zeros((H, 1, Cin), x.dtype)
        left = jnp.concatenate([zc, x[:, : W - 1, :]], axis=1)    # x[:, w-1, :]
        right = jnp.concatenate([x[:, 1:, :], zc], axis=1)        # x[:, w+1, :]
        xw = jnp.concatenate([left, x, right], axis=-1)           # (H, W, 3*Cin), kw in K
        zr = jnp.zeros((1, W, 3 * Cin), x.dtype)
        up = jnp.concatenate([zr, xw[: H - 1]], axis=0)           # xw[h-1] (zero halo)
        down = jnp.concatenate([xw[1:], zr], axis=0)              # xw[h+1] (zero halo)
        slab = jnp.concatenate([up, xw, down], axis=-1)           # (H, W, 9*Cin), kh major
        slab_ref[...] = slab.reshape(HW, 9 * Cin)

    # ---- conv as ONE big matmul on the MXU: (H*W, 9*Cin) @ (9*Cin, CT), f32 acc ----
    acc = jnp.dot(slab_ref[...], w_ref[...], preferred_element_type=jnp.float32)

    # ---- InstanceNorm (two-pass, centered) + affine + ReLU, all in f32 ----
    inv_hw = 1.0 / float(HW)
    mean = jnp.sum(acc, axis=0, keepdims=True) * inv_hw           # (1, CT)
    d = acc - mean
    var = jnp.sum(d * d, axis=0, keepdims=True) * inv_hw          # biased variance
    gamma = gb_ref[0].astype(jnp.float32)                         # (CT,)
    beta = gb_ref[1].astype(jnp.float32)                          # (CT,)
    k = lax.rsqrt(var + EPS) * gamma                              # (1, CT)
    out = jnp.maximum(d * k + beta, 0.0)                          # (HW, CT)
    out = out.reshape(H, W, CT).astype(o_ref.dtype)

    if Cs == CT:
        o_ref[0] = out                                            # lane-dense store
    else:
        o_ref[0] = out[:, :, :Cs]                                 # masked store (small Cout)


def _padded_bytes(shape, dtype):
    """Physical VMEM footprint of a buffer: last dim -> lanes (pad 128),
    second-to-last -> sublanes (pad 8, x2 for 16-bit packing)."""
    itemsize = jnp.dtype(dtype).itemsize
    sub = 8 * (4 // itemsize) if itemsize < 4 else 8
    lanes = -(-shape[-1] // 128) * 128
    rows = -(-shape[-2] // sub) * sub
    lead = 1
    for s in shape[:-2]:
        lead *= int(s)
    return lead * rows * lanes * itemsize


def basic_block_conv(x_nhwc, w, b, gamma, beta, *, compute_dtype=jnp.bfloat16):
    """Fused Conv3x3(pad=1) + InstanceNorm2d(affine) + ReLU (NHWC).

    x_nhwc: (N, H, W, Cin); w: (3, 3, Cin, Cout) HWIO; b/gamma/beta: (Cout,).
    Conv bias `b` is mathematically cancelled by the instance-norm mean subtraction,
    so it is accepted for API parity but not used by the kernel.
    """
    del b  # cancelled by InstanceNorm mean subtraction
    N, H, W, Cin = x_nhwc.shape
    Cout = w.shape[-1]
    out_dtype = x_nhwc.dtype
    K = 9 * Cin

    CP = ((Cout + 127) // 128) * 128                 # lane-padded channels for weights
    if Cout % 128 == 0:
        # Lane-dense output; tile Cout so the f32 accumulator stays small (v7x) and
        # the MXU N-dim matches the 256-wide array on v6e/v7x when possible.
        CT = min(256 if CP % 256 == 0 else 128, CP)
        num_ct = CP // CT
        out_C = CP                                   # == Cout, no slicing needed
    else:
        # Small / odd Cout: keep one channel tile and write the UNPADDED output
        # (masked stores, far fewer HBM writeback bytes than padding to 128).
        CT = CP
        num_ct = 1
        out_C = Cout

    # (3,3,Cin,Cout) HWIO -> (9*Cin, Cout): K index = kh*3*Cin + kw*Cin + cin,
    # matching the kernel's [up, xw, down] x [left, mid, right] slab ordering.
    wk = w.reshape(K, Cout).astype(compute_dtype)
    if CP != Cout:
        wk = jnp.pad(wk, ((0, 0), (0, CP - Cout)))
        gamma_p = jnp.pad(gamma, (0, CP - Cout))
        beta_p = jnp.pad(beta, (0, CP - Cout))
    else:
        gamma_p, beta_p = gamma, beta
    gb = jnp.stack([gamma_p, beta_p], axis=0).astype(jnp.float32)   # (2, CP)

    x_c = x_nhwc.astype(compute_dtype)

    # ---- honest per-step VMEM budget (lane/sublane padded), clamped to the chip ----
    est = 0
    est += 2 * _padded_bytes((1, H, W, Cin), compute_dtype)          # x block (dbl-buf)
    est += 2 * _padded_bytes((K, CT), compute_dtype)                 # weight tile
    est += 2 * _padded_bytes((2, CT), jnp.float32)                   # gamma/beta tile
    est += 2 * _padded_bytes((1, H, W, out_C if num_ct == 1 else CT), out_dtype)
    est += _padded_bytes((H * W, K), compute_dtype)                  # slab scratch
    est += 4 * _padded_bytes((H * W, CT), jnp.float32)               # acc / d / out temps
    est += 3 * _padded_bytes((H, W, 3 * Cin), compute_dtype)         # slab-assembly temps
    try:
        vmem_cap = int(pltpu.get_tpu_info().vmem_capacity_bytes)
    except Exception:
        vmem_cap = 64 * 2**20                                        # v7x per-TC floor
    vmem_limit = int(min(vmem_cap - 2 * 2**20, max(32 * 2**20, 2 * est)))

    flops = int(2 * N * H * W * K * CP)
    bytes_accessed = int(x_c.size * x_c.dtype.itemsize
                         + wk.size * wk.dtype.itemsize
                         + gb.size * gb.dtype.itemsize
                         + N * H * W * out_C * jnp.dtype(out_dtype).itemsize)
    cost = pl.CostEstimate(flops=flops, transcendentals=int(N * CP),
                           bytes_accessed=bytes_accessed)

    out = pl.pallas_call(
        _basic_block_kernel,
        out_shape=jax.ShapeDtypeStruct((N, H, W, out_C), out_dtype),
        grid_spec=pltpu.PrefetchScalarGridSpec(
            num_scalar_prefetch=0,
            grid=(N, num_ct),
            in_specs=[
                pl.BlockSpec((1, H, W, Cin), lambda n, c: (n, 0, 0, 0)),
                pl.BlockSpec((K, CT), lambda n, c: (0, c)),
                pl.BlockSpec((2, CT), lambda n, c: (0, c)),
            ],
            out_specs=pl.BlockSpec(
                (1, H, W, out_C if num_ct == 1 else CT),
                lambda n, c: (n, 0, 0, c)),
            scratch_shapes=[pltpu.VMEM((H * W, K), compute_dtype)],
        ),
        compiler_params=pltpu.CompilerParams(
            dimension_semantics=("parallel", "arbitrary"),
            vmem_limit_bytes=vmem_limit),
        cost_estimate=cost,
    )(x_c, wk, gb)

    return out


def basic_block_forward(x_nchw, w_oihw, b, gamma, beta, *, compute_dtype=jnp.bfloat16):
    """PyTorch-layout entry point: x (N, Cin, H, W), w (Cout, Cin, 3, 3)."""
    x_nhwc = jnp.transpose(x_nchw, (0, 2, 3, 1))
    w_hwio = jnp.transpose(w_oihw, (2, 3, 1, 0))
    y = basic_block_conv(x_nhwc, w_hwio, b, gamma, beta, compute_dtype=compute_dtype)
    return jnp.transpose(y, (0, 3, 1, 2))


def _reference_nchw(x, w, b, gamma, beta):
    # Pure-JAX f32 reference (conv WITH bias + InstanceNorm(affine) + ReLU), NCHW.
    y = lax.conv_general_dilated(
        x.astype(jnp.float32), w.astype(jnp.float32),
        window_strides=(1, 1), padding=((1, 1), (1, 1)),
        dimension_numbers=("NCHW", "OIHW", "NCHW"))
    y = y + b[None, :, None, None].astype(jnp.float32)
    mean = jnp.mean(y, axis=(2, 3), keepdims=True)
    var = jnp.mean((y - mean) ** 2, axis=(2, 3), keepdims=True)
    yn = (y - mean) * lax.rsqrt(var + EPS)
    return jnp.maximum(yn * gamma[None, :, None, None] + beta[None, :, None, None], 0.0)


if __name__ == "__main__":
    key = jax.random.PRNGKey(0)
    k_x, k_w, k_b = jax.random.split(key, 3)

    N, Cin, H, W = 2, 4, 16, 16
    Cout = 8

    x = jax.random.normal(k_x, (N, Cin, H, W), dtype=jnp.float32)
    w = 0.1 * jax.random.normal(k_w, (Cout, Cin, 3, 3), dtype=jnp.float32)
    b = 0.05 * jax.random.normal(k_b, (Cout,), dtype=jnp.float32)
    gamma = jnp.ones((Cout,), dtype=jnp.float32)      # InstanceNorm2d affine init
    beta = jnp.zeros((Cout,), dtype=jnp.float32)

    out = basic_block_forward(x, w, b, gamma, beta)
    out = jax.block_until_ready(out)

    ref = _reference_nchw(x, w, b, gamma, beta)
    assert out.shape == (N, Cout, H, W)
    # bf16 MXU operands (f32 accumulation/epilogue) vs. f32 reference:
    # tolerance set to bf16-operand level.
    assert jnp.allclose(out, ref, atol=3e-2, rtol=3e-2), float(jnp.max(jnp.abs(out - ref)))

    print("KERNEL_OK")
</pallas_src>

<mosaic_0001>
module attributes {stable_mosaic.version = 11 : i64} {
  func.func @_basic_block_kernel(%arg0: i32, %arg1: i32, %arg2: memref<1x16x16x4xbf16, #tpu.memory_space<vmem>>, %arg3: memref<36x128xbf16, #tpu.memory_space<vmem>>, %arg4: memref<2x128xf32, #tpu.memory_space<vmem>>, %arg5: memref<1x16x16x8xf32, #tpu.memory_space<vmem>>, %arg6: memref<256x36xbf16, #tpu.memory_space<vmem>>) attributes {dimension_semantics = [#tpu.dimension_semantics<parallel>, #tpu.dimension_semantics<arbitrary>], iteration_bounds = array<i64: 2, 1>, scalar_prefetch = 0 : i64, scratch_operands = 1 : i64, tpu.core_type = #tpu.core_type<tc>, window_params = [{transform_indices = @transform_0, window_bounds = array<i64: 1, 16, 16, 4>}, {transform_indices = @transform_1, window_bounds = array<i64: 36, 128>}, {transform_indices = @transform_2, window_bounds = array<i64: 2, 128>}, {transform_indices = @transform_3, window_bounds = array<i64: 1, 16, 16, 8>}]} {
    %c0_i32 = arith.constant 0 : i32
    %0 = arith.cmpi eq, %arg1, %c0_i32 : i32
    %1 = arith.extui %0 : i1 to i32
    %c0_i32_0 = arith.constant 0 : i32
    %2 = arith.cmpi ne, %1, %c0_i32_0 : i32
    scf.if %2 {
      %c0_17 = arith.constant 0 : index
      %c0_18 = arith.constant 0 : index
      %c0_19 = arith.constant 0 : index
      %c0_20 = arith.constant 0 : index
      %38 = vector.load %arg2[%c0_17, %c0_18, %c0_19, %c0_20] : memref<1x16x16x4xbf16, #tpu.memory_space<vmem>>, vector<1x16x16x4xbf16>
      %39 = vector.shape_cast %38 : vector<1x16x16x4xbf16> to vector<16x16x4xbf16>
      %cst_21 = arith.constant 0.000000e+00 : bf16
      %40 = vector.broadcast %cst_21 : bf16 to vector<16x1x4xbf16>
      %41 = vector.extract_strided_slice %39 {offsets = [0, 0, 0], sizes = [16, 15, 4], strides = [1, 1, 1]} : vector<16x16x4xbf16> to vector<16x15x4xbf16>
      %42 = tpu.concatenate %40, %41 in 1 : vector<16x1x4xbf16>, vector<16x15x4xbf16> -> vector<16x16x4xbf16>
      %43 = vector.extract_strided_slice %39 {offsets = [0, 1, 0], sizes = [16, 15, 4], strides = [1, 1, 1]} : vector<16x16x4xbf16> to vector<16x15x4xbf16>
      %44 = tpu.concatenate %43, %40 in 1 : vector<16x15x4xbf16>, vector<16x1x4xbf16> -> vector<16x16x4xbf16>
      %45 = tpu.concatenate %42, %39, %44 in 2 : vector<16x16x4xbf16>, vector<16x16x4xbf16>, vector<16x16x4xbf16> -> vector<16x16x12xbf16>
      %cst_22 = arith.constant 0.000000e+00 : bf16
      %46 = vector.broadcast %cst_22 : bf16 to vector<1x16x12xbf16>
      %47 = vector.extract_strided_slice %45 {offsets = [0, 0, 0], sizes = [15, 16, 12], strides = [1, 1, 1]} : vector<16x16x12xbf16> to vector<15x16x12xbf16>
      %48 = tpu.concatenate %46, %47 in 0 : vector<1x16x12xbf16>, vector<15x16x12xbf16> -> vector<16x16x12xbf16>
      %49 = vector.extract_strided_slice %45 {offsets = [1, 0, 0], sizes = [15, 16, 12], strides = [1, 1, 1]} : vector<16x16x12xbf16> to vector<15x16x12xbf16>
      %50 = tpu.concatenate %49, %46 in 0 : vector<15x16x12xbf16>, vector<1x16x12xbf16> -> vector<16x16x12xbf16>
      %51 = tpu.concatenate %48, %45, %50 in 2 : vector<16x16x12xbf16>, vector<16x16x12xbf16>, vector<16x16x12xbf16> -> vector<16x16x36xbf16>
      %52 = vector.shape_cast %51 : vector<16x16x36xbf16> to vector<256x36xbf16>
      %c0_23 = arith.constant 0 : index
      %c0_24 = arith.constant 0 : index
      %53 = vector.load %arg6[%c0_23, %c0_24] : memref<256x36xbf16, #tpu.memory_space<vmem>>, vector<256x36xbf16>
      tpu.vector_store %arg6[%c0_23, %c0_24], %52 {strides = array<i32>} : memref<256x36xbf16, #tpu.memory_space<vmem>>, vector<256x36xbf16>,
    } else {
    }
    %c0 = arith.constant 0 : index
    %c0_1 = arith.constant 0 : index
    %3 = vector.load %arg6[%c0, %c0_1] : memref<256x36xbf16, #tpu.memory_space<vmem>>, vector<256x36xbf16>
    %c0_2 = arith.constant 0 : index
    %c0_3 = arith.constant 0 : index
    %4 = vector.load %arg3[%c0_2, %c0_3] : memref<36x128xbf16, #tpu.memory_space<vmem>>, vector<36x128xbf16>
    %cst = arith.constant dense<0.000000e+00> : vector<256x128xf32>
    %5 = tpu.matmul %3, %4, %cst {dimension_numbers = #tpu.dot_dimension_numbers<[1], [0], [0], [1], [0, 0, 1, 1], [], []>} : vector<256x36xbf16>, vector<36x128xbf16>, vector<256x128xf32> -> vector<256x128xf32>
    %cst_4 = arith.constant dense<0.000000e+00> : vector<128xf32>
    %6 = vector.multi_reduction <add>, %5, %cst_4 [0] : vector<256x128xf32> to vector<128xf32>
    %7 = vector.shape_cast %6 : vector<128xf32> to vector<1x128xf32>
    %cst_5 = arith.constant 3.906250e-03 : f32
    %8 = vector.broadcast %cst_5 : f32 to vector<1x128xf32>
    %9 = arith.mulf %7, %8 : vector<1x128xf32>
    %10 = vector.broadcast %9 : vector<1x128xf32> to vector<256x128xf32>
    %11 = arith.subf %5, %10 : vector<256x128xf32>
    %12 = arith.mulf %11, %11 : vector<256x128xf32>
    %cst_6 = arith.constant dense<0.000000e+00> : vector<128xf32>
    %13 = vector.multi_reduction <add>, %12, %cst_6 [0] : vector<256x128xf32> to vector<128xf32>
    %14 = vector.shape_cast %13 : vector<128xf32> to vector<1x128xf32>
    %cst_7 = arith.constant 3.906250e-03 : f32
    %15 = vector.broadcast %cst_7 : f32 to vector<1x128xf32>
    %16 = arith.mulf %14, %15 : vector<1x128xf32>
    %c0_8 = arith.constant 0 : index
    %c0_9 = arith.constant 0 : index
    %17 = vector.load %arg4[%c0_8, %c0_9] : memref<2x128xf32, #tpu.memory_space<vmem>>, vector<1x128xf32>
    %18 = vector.shape_cast %17 : vector<1x128xf32> to vector<128xf32>
    %c1 = arith.constant 1 : index
    %c0_10 = arith.constant 0 : index
    %19 = vector.load %arg4[%c1, %c0_10] : memref<2x128xf32, #tpu.memory_space<vmem>>, vector<1x128xf32>
    %20 = vector.shape_cast %19 : vector<1x128xf32> to vector<128xf32>
    %cst_11 = arith.constant 9.99999974E-6 : f32
    %21 = vector.broadcast %cst_11 : f32 to vector<1x128xf32>
    %22 = arith.addf %16, %21 : vector<1x128xf32>
    %23 = math.rsqrt %22 : vector<1x128xf32>
    %24 = vector.shape_cast %18 : vector<128xf32> to vector<1x128xf32>
    %25 = arith.mulf %23, %24 : vector<1x128xf32>
    %26 = vector.broadcast %25 : vector<1x128xf32> to vector<256x128xf32>
    %27 = arith.mulf %11, %26 : vector<256x128xf32>
    %28 = vector.shape_cast %20 : vector<128xf32> to vector<1x128xf32>
    %29 = vector.broadcast %28 : vector<1x128xf32> to vector<256x128xf32>
    %30 = arith.addf %27, %29 : vector<256x128xf32>
    %cst_12 = arith.constant 0.000000e+00 : f32
    %31 = vector.broadcast %cst_12 : f32 to vector<256x128xf32>
    %32 = arith.maximumf %30, %31 : vector<256x128xf32>
    %33 = vector.shape_cast %32 : vector<256x128xf32> to vector<16x16x128xf32>
    %34 = vector.extract_strided_slice %33 {offsets = [0, 0, 0], sizes = [16, 16, 8], strides = [1, 1, 1]} : vector<16x16x128xf32> to vector<16x16x8xf32>
    %c0_13 = arith.constant 0 : index
    %c0_14 = arith.constant 0 : index
    %c0_15 = arith.constant 0 : index
    %c0_16 = arith.constant 0 : index
    %35 = vector.load %arg5[%c0_13, %c0_14, %c0_15, %c0_16] : memref<1x16x16x8xf32, #tpu.memory_space<vmem>>, vector<1x16x16x8xf32>
    %36 = vector.shape_cast %35 : vector<1x16x16x8xf32> to vector<16x16x8xf32>
    %37 = vector.shape_cast %34 : vector<16x16x8xf32> to vector<1x16x16x8xf32>
    tpu.vector_store %arg5[%c0_13, %c0_14, %c0_15, %c0_16], %37 {strides = array<i32>} : memref<1x16x16x8xf32, #tpu.memory_space<vmem>>, vector<1x16x16x8xf32>,
    return
  }
  func.func @transform_0(%arg0: i32, %arg1: i32) -> (i32, i32, i32, i32) {
    %c0_i32 = arith.constant 0 : i32
    %c0_i32_0 = arith.constant 0 : i32
    %c0_i32_1 = arith.constant 0 : i32
    %c0_i32_2 = arith.constant 0 : i32
    return %arg0, %c0_i32, %c0_i32_0, %c0_i32_1 : i32, i32, i32, i32
  }
  func.func @transform_1(%arg0: i32, %arg1: i32) -> (i32, i32) {
    %c0_i32 = arith.constant 0 : i32
    %c0_i32_0 = arith.constant 0 : i32
    return %c0_i32, %arg1 : i32, i32
  }
  func.func @transform_2(%arg0: i32, %arg1: i32) -> (i32, i32) {
    %c0_i32 = arith.constant 0 : i32
    %c0_i32_0 = arith.constant 0 : i32
    return %c0_i32, %arg1 : i32, i32
  }
  func.func @transform_3(%arg0: i32, %arg1: i32) -> (i32, i32, i32, i32) {
    %c0_i32 = arith.constant 0 : i32
    %c0_i32_0 = arith.constant 0 : i32
    %c0_i32_1 = arith.constant 0 : i32
    return %arg0, %c0_i32, %c0_i32_0, %arg1 : i32, i32, i32, i32
  }
}

</mosaic_0001>

<llo_original>
// kernel: tpu_custom_call.1
$region0: #{tpu_custom_call.1}
  #allocation0 [shape = 'u32[]', space=smem, size = 0x4, offset = 0x4, fixed_abs, tag = 'smem constant byte address 0x4 - core index']
  #allocation1 [shape = 'u32[144,128]{1,0:T(1,128)}', space=vmem, size = 0x12000, scoped, tag = 'internal scratch']
  #allocation2 [shape = 'bf16[256,36]{1,0:T(8,128)(2,1)}', space=vmem, size = 0x10000, scoped, tag = 'scratch operand']
  %s0 = inlined_call_operand.vmem [shape: bf16[2,16,16,4], index: 0, kind: input, shape index: {}]
  %s1 = inlined_call_operand.vmem [shape: bf16[36,128], index: 1, kind: input, shape index: {}]
  %s2 = inlined_call_operand.vmem [shape: f32[2,128], index: 2, kind: input, shape index: {}]
  %s3 = inlined_call_operand.vmem [shape: f32[2,16,16,8], index: 3, kind: output, shape index: {}]
  %s4 = sld [smem:[#allocation0]]
  $region49: #{tpu_custom_call.1} parent=0
    _
  %s6 = ssub.s32 1, %s4
  %s7 = scalar_select 0, %s6, %s4
  loop: start=0, step=1, limit=4
  $region2: #{tpu_custom_call.1} parent=0 // loop_pre_header
    _
  $region3: #{tpu_custom_call.1} parent=0 // loop_header
    %s9 = sphi 0, %s13
    %p10 = scmp.ge.s32.totalorder %s9, 4
    %s16 = sphi 0, %s28
    %s17 = sphi 0, %s24
    %s18 = sphi 0, %s16
    %s19 = sphi 0, %s17
    %s20 = sphi 0, %s18
    %s21 = sphi 0, %s19
    %s31 = sphi 0, %s33
    %s34 = sphi 0, %s31
    %s35 = sphi 0, %s34
    %s51 = sphi 0, %s35
    %s57 = sphi 0, %s59
    %s60 = sphi 0, %s57
    %s61 = sphi 0, %s60
    %s77 = sphi 0, %s61
    %s83 = sphi 0, %s85
    %s86 = sphi 0, %s83
    %s87 = sphi 0, %s86
    %s103 = sphi 0, %s87
    %s111 = sphi 0, %s113
    %s114 = sphi 0, %s111
    %s115 = sphi 0, %s114
    %s131 = sphi 0, %s115
  $region4: #{tpu_custom_call.1} parent=0 // loop_header_branch
    %12 = sbr.rel (%p10) target = $region8
  $region5: #{tpu_custom_call.1} parent=0 // loop_body
    %s14 = ssub.s32 %s9, 1
    %s15 = ssub.s32 %s9, 2
    %s22 = sadd.s32 1, %s17
    %p23 = scmp.ge.s32.totalorder %s22, 1
    %s24 = scalar_select %p23, 0, %s22
    %s25 = sadd.s32 1, %s16
    %s26 = scalar_select %p23, %s25, %s16
    %p27 = scmp.ge.s32.totalorder %s26, 2
    %s28 = scalar_select %p27, 0, %s26
    %s29 = ssub.s32 %s16, %s28
    %p30 = scmp.eq.s32.totalorder %s29, 0
    %s32 = sadd.s32 %s31, 1
    %s33 = scalar_select %p30, %s31, %s32
    %p36 = pneg %p30
    %p37 = scmp.eq.s32.totalorder %s9, 1
    %p38 = por %p36, %p37
    %p39 = scmp.ne.s32.totalorder %s31, %s34
    %p40 = scmp.eq.s32.totalorder %s9, 0
    %p41 = por %p39, %p40
    %p42 = scmp.ne.s32.totalorder %s31, %s34
    %p43 = scmp.eq.s32.totalorder %s14, 1
    %p44 = por %p42, %p43
    %p45 = scmp.ne.s32.totalorder %s34, %s35
    %p46 = scmp.eq.s32.totalorder %s14, 0
    %p47 = por %p45, %p46
    %p48 = scmp.ne.s32.totalorder %s34, %s35
    %p49 = scmp.eq.s32.totalorder %s15, 1
    %p50 = por %p48, %p49
    %p52 = scmp.ne.s32.totalorder %s35, %s51
    %p53 = scmp.eq.s32.totalorder %s15, 0
    %p54 = por %p52, %p53
    %s55 = ssub.s32 %s17, %s24
    %p56 = scmp.eq.s32.totalorder %s55, 0
    %s58 = sadd.s32 %s57, 1
    %s59 = scalar_select %p56, %s57, %s58
    %p62 = pneg %p56
    %p63 = scmp.eq.s32.totalorder %s9, 1
    %p64 = por %p62, %p63
    %p65 = scmp.ne.s32.totalorder %s57, %s60
    %p66 = scmp.eq.s32.totalorder %s9, 0
    %p67 = por %p65, %p66
    %p68 = scmp.ne.s32.totalorder %s57, %s60
    %p69 = scmp.eq.s32.totalorder %s14, 1
    %p70 = por %p68, %p69
    %p71 = scmp.ne.s32.totalorder %s60, %s61
    %p72 = scmp.eq.s32.totalorder %s14, 0
    %p73 = por %p71, %p72
    %p74 = scmp.ne.s32.totalorder %s60, %s61
    %p75 = scmp.eq.s32.totalorder %s15, 1
    %p76 = por %p74, %p75
    %p78 = scmp.ne.s32.totalorder %s61, %s77
    %p79 = scmp.eq.s32.totalorder %s15, 0
    %p80 = por %p78, %p79
    %s81 = ssub.s32 %s17, %s24
    %p82 = scmp.eq.s32.totalorder %s81, 0
    %s84 = sadd.s32 %s83, 1
    %s85 = scalar_select %p82, %s83, %s84
    %p88 = pneg %p82
    %p89 = scmp.eq.s32.totalorder %s9, 1
    %p90 = por %p88, %p89
    %p91 = scmp.ne.s32.totalorder %s83, %s86
    %p92 = scmp.eq.s32.totalorder %s9, 0
    %p93 = por %p91, %p92
    %p94 = scmp.ne.s32.totalorder %s83, %s86
    %p95 = scmp.eq.s32.totalorder %s14, 1
    %p96 = por %p94, %p95
    %p97 = scmp.ne.s32.totalorder %s86, %s87
    %p98 = scmp.eq.s32.totalorder %s14, 0
    %p99 = por %p97, %p98
    %p100 = scmp.ne.s32.totalorder %s86, %s87
    %p101 = scmp.eq.s32.totalorder %s15, 1
    %p102 = por %p100, %p101
    %p104 = scmp.ne.s32.totalorder %s87, %s103
    %p105 = scmp.eq.s32.totalorder %s15, 0
    %p106 = por %p104, %p105
    %s107 = ssub.s32 %s16, %s28
    %s108 = ssub.s32 %s17, %s24
    %s109 = sor.u32 %s107, %s108
    %p110 = scmp.eq.s32.totalorder %s109, 0
    %s112 = sadd.s32 %s111, 1
    %s113 = scalar_select %p110, %s111, %s112
    %p116 = pneg %p110
    %p117 = scmp.eq.s32.totalorder %s9, 1
    %p118 = por %p116, %p117
    %p119 = scmp.ne.s32.totalorder %s111, %s114
    %p120 = scmp.eq.s32.totalorder %s9, 0
    %p121 = por %p119, %p120
    %p122 = scmp.ne.s32.totalorder %s111, %s114
    %p123 = scmp.eq.s32.totalorder %s14, 1
    %p124 = por %p122, %p123
    %p125 = scmp.ne.s32.totalorder %s114, %s115
    %p126 = scmp.eq.s32.totalorder %s14, 0
    %p127 = por %p125, %p126
    %p128 = scmp.ne.s32.totalorder %s114, %s115
    %p129 = scmp.eq.s32.totalorder %s15, 1
    %p130 = por %p128, %p129
    %p132 = scmp.ne.s32.totalorder %s115, %s131
    %p133 = scmp.eq.s32.totalorder %s15, 0
    %p134 = por %p132, %p133
    %p135 = scmp.le.s32.totalorder 1, %s9
    %p136 = scmp.lt.s32.totalorder %s9, 3
    %p137 = pnand %p135, %p136
    %p138 = pneg %p137
    // Predicated region
    $region9: #{tpu_custom_call.1} parent=5 // pred_check
      _
    $region10: #{tpu_custom_call.1} parent=5 // pred_check_branch
      %140 = sbr.rel (%p137) target = $region12
    $region11: #{tpu_custom_call.1} parent=5 // pred_region
      %s141 = ssub.s32 %s9, 1
      // Predicated region
      $region13: #{tpu_custom_call.1} parent=11 // pred_check
        %p142 = pneg %p73
      $region14: #{tpu_custom_call.1} parent=11 // pred_check_branch
        %144 = sbr.rel (%p142) target = $region16
      $region15: #{tpu_custom_call.1} parent=11 // pred_region
        %p145 = scmp.lt.s32.totalorder %s19, 0
        %s146 = scalar_select %p145, %s19, 0
        %s147 = smul.addr %s146, 4
        %s148 = scalar_lea.vmem %s1, %s147
      $region16: #{tpu_custom_call.1} parent=11 // pred_fallthru
        _
      // Predicated region
      $region17: #{tpu_custom_call.1} parent=11 // pred_check
        %p149 = pneg %p99
      $region18: #{tpu_custom_call.1} parent=11 // pred_check_branch
        %151 = sbr.rel (%p149) target = $region20
      $region19: #{tpu_custom_call.1} parent=11 // pred_region
        %p152 = scmp.lt.s32.totalorder %s19, 0
        %s153 = scalar_select %p152, %s19, 0
        %s154 = smul.addr %s153, 2
        %s155 = scalar_lea.vmem %s2, %s154
      $region20: #{tpu_custom_call.1} parent=11 // pred_fallthru
        _
    $region12: #{tpu_custom_call.1} parent=5 // pred_fallthru
      _
    %p156 = scmp.lt.s32.totalorder %s9, 2
    // Predicated region
    $region21: #{tpu_custom_call.1} parent=5 // pred_check
      %p157 = pneg %p156
    $region22: #{tpu_custom_call.1} parent=5 // pred_check_branch
      %159 = sbr.rel (%p157) target = $region24
    $region23: #{tpu_custom_call.1} parent=5 // pred_region
      // Predicated region
      $region25: #{tpu_custom_call.1} parent=23 // pred_check
        %p160 = pneg %p41
      $region26: #{tpu_custom_call.1} parent=23 // pred_check_branch
        %162 = sbr.rel (%p160) target = $region28
      $region27: #{tpu_custom_call.1} parent=23 // pred_region
        %p163 = scmp.lt.s32.totalorder %s16, 1
        %s164 = scalar_select %p163, %s16, 1
        %s165 = smul.addr %s164, 32
        %s166 = smul.addr %s165, 4
        %s167 = scalar_lea.vmem %s0, %s166
      $region28: #{tpu_custom_call.1} parent=23 // pred_fallthru
        _
    $region24: #{tpu_custom_call.1} parent=5 // pred_fallthru
      _
    %p168 = scmp.le.s32.totalorder 1, %s9
    %p169 = scmp.lt.s32.totalorder %s9, 3
    %p170 = pnand %p168, %p169
    %p171 = pneg %p170
    // Predicated region
    $region29: #{tpu_custom_call.1} parent=5 // pred_check
      _
    $region30: #{tpu_custom_call.1} parent=5 // pred_check_branch
      %173 = sbr.rel (%p170) target = $region32
    $region31: #{tpu_custom_call.1} parent=5 // pred_region
      %s174 = ssub.s32 %s9, 1
      %p175 = scmp.lt.s32.totalorder %s18, 1
      %s176 = scalar_select %p175, %s18, 1
      %s177 = smul.addr %s176, 32
      %s178 = smul.addr %s177, 4
      %s179 = scalar_lea.vmem %s0, %s178
      %p180 = pneg %p47
      %p181 = pneg %p44
      %p182 = scmp.lt.s32.totalorder %s19, 0
      %s183 = scalar_select %p182, %s19, 0
      %s184 = smul.addr %s183, 4
      %s185 = scalar_lea.vmem %s1, %s184
      %p186 = pneg %p73
      %p187 = pneg %p70
      %p188 = scmp.lt.s32.totalorder %s19, 0
      %s189 = scalar_select %p188, %s19, 0
      %s190 = smul.addr %s189, 2
      %s191 = scalar_lea.vmem %s2, %s190
      %p192 = pneg %p99
      %p193 = pneg %p96
      %p194 = pneg %p127
      %p195 = pneg %p124
      %p196 = scmp.lt.s32.totalorder %s18, 1
      %s197 = scalar_select %p196, %s18, 1
      %p198 = scmp.lt.s32.totalorder %s19, 0
      %s199 = scalar_select %p198, %s19, 0
      %s200 = smul.addr %s197, 32
      %s201 = sadd.s32 %s199, %s200
      %s202 = smul.addr %s201, 8
      %s203 = scalar_lea.vmem %s3, %s202
      %p204 = scmp.lt.s32.totalorder %s18, 1
      %s205 = scalar_select %p204, %s18, 1
      %s206 = smul.addr %s205, 32
      %s207 = smul.addr %s206, 4
      %s208 = scalar_lea.vmem %s0, %s207
      %p209 = scmp.lt.s32.totalorder %s19, 0
      %s210 = scalar_select %p209, %s19, 0
      %s211 = smul.addr %s210, 4
      %s212 = scalar_lea.vmem %s1, %s211
      %p213 = scmp.lt.s32.totalorder %s19, 0
      %s214 = scalar_select %p213, %s19, 0
      %s215 = smul.addr %s214, 2
      %s216 = scalar_lea.vmem %s2, %s215
      %p217 = scmp.lt.s32.totalorder %s18, 1
      %s218 = scalar_select %p217, %s18, 1
      %p219 = scmp.lt.s32.totalorder %s19, 0
      %s220 = scalar_select %p219, %s19, 0
      %s221 = smul.addr %s218, 32
      %s222 = sadd.s32 %s220, %s221
      %s223 = smul.addr %s222, 8
      %s224 = scalar_lea.vmem %s3, %s223
      %p226 = scmp.eq.s32.totalorder %s19, 0
      // Predicated region
      $region33: #{tpu_custom_call.1} parent=31 // pred_check
        %p227 = pneg %p226
      $region34: #{tpu_custom_call.1} parent=31 // pred_check_branch
        %229 = sbr.rel (%p227) target = $region36
      $region35: #{tpu_custom_call.1} parent=31 // pred_region
        %v230 = vld [vmem:[%s208] sm:$0xf]
        %v231 = vld [vmem:[%s208 + $0x4] sm:$0xf]
        %v232 = vld [vmem:[%s208 + $0x8] sm:$0xf]
        %v233 = vld [vmem:[%s208 + $0xc] sm:$0xf]
        %v234 = vld [vmem:[%s208 + $0x10] sm:$0xf]
        %v235 = vld [vmem:[%s208 + $0x14] sm:$0xf]
        %v236 = vld [vmem:[%s208 + $0x18] sm:$0xf]
        %v237 = vld [vmem:[%s208 + $0x1c] sm:$0xf]
        %v238 = vld [vmem:[%s208 + $0x20] sm:$0xf]
        %v239 = vld [vmem:[%s208 + $0x24] sm:$0xf]
        %v240 = vld [vmem:[%s208 + $0x28] sm:$0xf]
        %v241 = vld [vmem:[%s208 + $0x2c] sm:$0xf]
        %v242 = vld [vmem:[%s208 + $0x30] sm:$0xf]
        %v243 = vld [vmem:[%s208 + $0x34] sm:$0xf]
        %v244 = vld [vmem:[%s208 + $0x38] sm:$0xf]
        %v245 = vld [vmem:[%s208 + $0x3c] sm:$0xf]
        %v246 = vld [vmem:[%s208 + $0x40] sm:$0xf]
        %v247 = vld [vmem:[%s208 + $0x44] sm:$0xf]
        %v248 = vld [vmem:[%s208 + $0x48] sm:$0xf]
        %v249 = vld [vmem:[%s208 + $0x4c] sm:$0xf]
        %v250 = vld [vmem:[%s208 + $0x50] sm:$0xf]
        %v251 = vld [vmem:[%s208 + $0x54] sm:$0xf]
        %v252 = vld [vmem:[%s208 + $0x58] sm:$0xf]
        %v253 = vld [vmem:[%s208 + $0x5c] sm:$0xf]
        %v254 = vld [vmem:[%s208 + $0x60] sm:$0xf]
        %v255 = vld [vmem:[%s208 + $0x64] sm:$0xf]
        %v256 = vld [vmem:[%s208 + $0x68] sm:$0xf]
        %v257 = vld [vmem:[%s208 + $0x6c] sm:$0xf]
        %v258 = vld [vmem:[%s208 + $0x70] sm:$0xf]
        %v259 = vld [vmem:[%s208 + $0x74] sm:$0xf]
        %v260 = vld [vmem:[%s208 + $0x78] sm:$0xf]
        %v261 = vld [vmem:[%s208 + $0x7c] sm:$0xf]
        %v294 = vunpack.c.l.b16 %v230
        %v295 = vunpack.c.l.b16 %v231
        %v296 = vunpack.c.l.b16 %v232
        %v297 = vunpack.c.l.b16 %v233
        %v298 = vunpack.c.l.b16 %v234
        %v299 = vunpack.c.l.b16 %v235
        %v300 = vunpack.c.l.b16 %v236
        %v301 = vunpack.c.l.b16 %v237
        %v302 = vunpack.c.l.b16 %v238
        %v303 = vunpack.c.l.b16 %v239
        %v304 = vunpack.c.l.b16 %v240
        %v305 = vunpack.c.l.b16 %v241
        %v306 = vunpack.c.l.b16 %v242
        %v307 = vunpack.c.l.b16 %v243
        %v308 = vunpack.c.l.b16 %v244
        %v309 = vunpack.c.l.b16 %v245
        %v310 = vunpack.c.l.b16 %v246
        %v311 = vunpack.c.l.b16 %v247
        %v312 = vunpack.c.l.b16 %v248
        %v313 = vunpack.c.l.b16 %v249
        %v314 = vunpack.c.l.b16 %v250
        %v315 = vunpack.c.l.b16 %v251
        %v316 = vunpack.c.l.b16 %v252
        %v317 = vunpack.c.l.b16 %v253
        %v318 = vunpack.c.l.b16 %v254
        %v319 = vunpack.c.l.b16 %v255
        %v320 = vunpack.c.l.b16 %v256
        %v321 = vunpack.c.l.b16 %v257
        %v322 = vunpack.c.l.b16 %v258
        %v323 = vunpack.c.l.b16 %v259
        %v324 = vunpack.c.l.b16 %v260
        %v325 = vunpack.c.l.b16 %v261
        %v326 = vpack.c.b16 %v295, %v294
        %v327 = vpack.c.b16 %v297, %v296
        %v328 = vpack.c.b16 %v299, %v298
        %v329 = vpack.c.b16 %v301, %v300
        %v330 = vpack.c.b16 %v303, %v302
        %v331 = vpack.c.b16 %v305, %v304
        %v332 = vpack.c.b16 %v307, %v306
        %v333 = vpack.c.b16 %v309, %v308
        %v334 = vpack.c.b16 %v311, %v310
        %v335 = vpack.c.b16 %v313, %v312
        %v336 = vpack.c.b16 %v315, %v314
        %v337 = vpack.c.b16 %v317, %v316
        %v338 = vpack.c.b16 %v319, %v318
        %v339 = vpack.c.b16 %v321, %v320
        %v340 = vpack.c.b16 %v323, %v322
        %v341 = vpack.c.b16 %v325, %v324
        %v343 = vshrl.u32 %v326, 16
        %v345 = vrot.slane %v343, 7
        %v346 = vshll.u32 %v326, 16
        %v348 = vor.u32 %v345, %v346
        %v350 = vshrl.u32 %v327, 16
        %v352 = vrot.slane %v350, 7
        %v353 = vshll.u32 %v327, 16
        %v355 = vor.u32 %v352, %v353
        %v357 = vshrl.u32 %v328, 16
        %v359 = vrot.slane %v357, 7
        %v360 = vshll.u32 %v328, 16
        %v362 = vor.u32 %v359, %v360
        %v364 = vshrl.u32 %v329, 16
        %v366 = vrot.slane %v364, 7
        %v367 = vshll.u32 %v329, 16
        %v369 = vor.u32 %v366, %v367
        %v371 = vshrl.u32 %v330, 16
        %v373 = vrot.slane %v371, 7
        %v374 = vshll.u32 %v330, 16
        %v376 = vor.u32 %v373, %v374
        %v378 = vshrl.u32 %v331, 16
        %v380 = vrot.slane %v378, 7
        %v381 = vshll.u32 %v331, 16
        %v383 = vor.u32 %v380, %v381
        %v385 = vshrl.u32 %v332, 16
        %v387 = vrot.slane %v385, 7
        %v388 = vshll.u32 %v332, 16
        %v390 = vor.u32 %v387, %v388
        %v392 = vshrl.u32 %v333, 16
        %v394 = vrot.slane %v392, 7
        %v395 = vshll.u32 %v333, 16
        %v397 = vor.u32 %v394, %v395
        %v399 = vshrl.u32 %v334, 16
        %v401 = vrot.slane %v399, 7
        %v402 = vshll.u32 %v334, 16
        %v404 = vor.u32 %v401, %v402
        %v406 = vshrl.u32 %v335, 16
        %v408 = vrot.slane %v406, 7
        %v409 = vshll.u32 %v335, 16
        %v411 = vor.u32 %v408, %v409
        %v413 = vshrl.u32 %v336, 16
        %v415 = vrot.slane %v413, 7
        %v416 = vshll.u32 %v336, 16
        %v418 = vor.u32 %v415, %v416
        %v420 = vshrl.u32 %v337, 16
        %v422 = vrot.slane %v420, 7
        %v423 = vshll.u32 %v337, 16
        %v425 = vor.u32 %v422, %v423
        %v427 = vshrl.u32 %v338, 16
        %v429 = vrot.slane %v427, 7
        %v430 = vshll.u32 %v338, 16
        %v432 = vor.u32 %v429, %v430
        %v434 = vshrl.u32 %v339, 16
        %v436 = vrot.slane %v434, 7
        %v437 = vshll.u32 %v339, 16
        %v439 = vor.u32 %v436, %v437
        %v441 = vshrl.u32 %v340, 16
        %v443 = vrot.slane %v441, 7
        %v444 = vshll.u32 %v340, 16
        %v446 = vor.u32 %v443, %v444
        %v448 = vshrl.u32 %v341, 16
        %v450 = vrot.slane %v448, 7
        %v451 = vshll.u32 %v341, 16
        %v453 = vor.u32 %v450, %v451
        %vm470 = vcmask 1040384
        %vm471 = vsmask.f32 256
        %vm472 = vmand %vm470, %vm471
        %v473 = vsel %vm472, 0, %v348
        %v474 = vsel %vm472, 0, %v355
        %v475 = vsel %vm472, 0, %v362
        %v476 = vsel %vm472, 0, %v369
        %v477 = vsel %vm472, 0, %v376
        %v478 = vsel %vm472, 0, %v383
        %v479 = vsel %vm472, 0, %v390
        %v480 = vsel %vm472, 0, %v397
        %v481 = vsel %vm472, 0, %v404
        %v482 = vsel %vm472, 0, %v411
        %v483 = vsel %vm472, 0, %v418
        %v484 = vsel %vm472, 0, %v425
        %v485 = vsel %vm472, 0, %v432
        %v486 = vsel %vm472, 0, %v439
        %v487 = vsel %vm472, 0, %v446
        %v488 = vsel %vm472, 0, %v453
        %v489 = vrot.slane %v346, 1
        %v490 = vor.u32 %v343, %v489
        %v491 = vrot.slane %v353, 1
        %v492 = vor.u32 %v350, %v491
        %v493 = vrot.slane %v360, 1
        %v494 = vor.u32 %v357, %v493
        %v495 = vrot.slane %v367, 1
        %v496 = vor.u32 %v364, %v495
        %v497 = vrot.slane %v374, 1
        %v498 = vor.u32 %v371, %v497
        %v499 = vrot.slane %v381, 1
        %v500 = vor.u32 %v378, %v499
        %v501 = vrot.slane %v388, 1
        %v502 = vor.u32 %v385, %v501
        %v503 = vrot.slane %v395, 1
        %v504 = vor.u32 %v392, %v503
        %v505 = vrot.slane %v402, 1
        %v506 = vor.u32 %v399, %v505
        %v507 = vrot.slane %v409, 1
        %v508 = vor.u32 %v406, %v507
        %v509 = vrot.slane %v416, 1
        %v510 = vor.u32 %v413, %v509
        %v511 = vrot.slane %v423, 1
        %v512 = vor.u32 %v420, %v511
        %v513 = vrot.slane %v430, 1
        %v514 = vor.u32 %v427, %v513
        %v515 = vrot.slane %v437, 1
        %v516 = vor.u32 %v434, %v515
        %v517 = vrot.slane %v444, 1
        %v518 = vor.u32 %v441, %v517
        %v519 = vrot.slane %v451, 1
        %v520 = vor.u32 %v448, %v519
        %vm537 = vcmask 1047552
        %vm538 = vsmask.f32 7424
        %vm539 = vmand %vm537, %vm538
        %v540 = vsel %vm539, %v490, 0
        %v541 = vsel %vm539, %v492, 0
        %v542 = vsel %vm539, %v494, 0
        %v543 = vsel %vm539, %v496, 0
        %v544 = vsel %vm539, %v498, 0
        %v545 = vsel %vm539, %v500, 0
        %v546 = vsel %vm539, %v502, 0
        %v547 = vsel %vm539, %v504, 0
        %v548 = vsel %vm539, %v506, 0
        %v549 = vsel %vm539, %v508, 0
        %v550 = vsel %vm539, %v510, 0
        %v551 = vsel %vm539, %v512, 0
        %v552 = vsel %vm539, %v514, 0
        %v553 = vsel %vm539, %v516, 0
        %v554 = vsel %vm539, %v518, 0
        %v555 = vsel %vm539, %v520, 0
        %556 = vrot.lane.b32.xlu0 %v326, 4
        %v557 = vpop.permute.xlu0 %556
        %558 = vrot.lane.b32.xlu0 %v327, 4
        %v559 = vpop.permute.xlu0 %558
        %560 = vrot.lane.b32.xlu0 %v328, 4
        %v561 = vpop.permute.xlu0 %560
        %562 = vrot.lane.b32.xlu0 %v329, 4
        %v563 = vpop.permute.xlu0 %562
        %564 = vrot.lane.b32.xlu0 %v330, 4
        %v565 = vpop.permute.xlu0 %564
        %566 = vrot.lane.b32.xlu0 %v331, 4
        %v567 = vpop.permute.xlu0 %566
        %568 = vrot.lane.b32.xlu0 %v332, 4
        %v569 = vpop.permute.xlu0 %568
        %570 = vrot.lane.b32.xlu0 %v333, 4
        %v571 = vpop.permute.xlu0 %570
        %572 = vrot.lane.b32.xlu0 %v334, 4
        %v573 = vpop.permute.xlu0 %572
        %574 = vrot.lane.b32.xlu0 %v335, 4
        %v575 = vpop.permute.xlu0 %574
        %576 = vrot.lane.b32.xlu0 %v336, 4
        %v577 = vpop.permute.xlu0 %576
        %578 = vrot.lane.b32.xlu0 %v337, 4
        %v579 = vpop.permute.xlu0 %578
        %580 = vrot.lane.b32.xlu0 %v338, 4
        %v581 = vpop.permute.xlu0 %580
        %582 = vrot.lane.b32.xlu0 %v339, 4
        %v583 = vpop.permute.xlu0 %582
        %584 = vrot.lane.b32.xlu0 %v340, 4
        %v585 = vpop.permute.xlu0 %584
        %586 = vrot.lane.b32.xlu0 %v341, 4
        %v587 = vpop.permute.xlu0 %586
        %604 = vrot.lane.b32.xlu0 %v540, 8
        %v605 = vpop.permute.xlu0 %604
        %606 = vrot.lane.b32.xlu0 %v541, 8
        %v607 = vpop.permute.xlu0 %606
        %608 = vrot.lane.b32.xlu0 %v542, 8
        %v609 = vpop.permute.xlu0 %608
        %610 = vrot.lane.b32.xlu0 %v543, 8
        %v611 = vpop.permute.xlu0 %610
        %612 = vrot.lane.b32.xlu0 %v544, 8
        %v613 = vpop.permute.xlu0 %612
        %614 = vrot.lane.b32.xlu0 %v545, 8
        %v615 = vpop.permute.xlu0 %614
        %616 = vrot.lane.b32.xlu0 %v546, 8
        %v617 = vpop.permute.xlu0 %616
        %618 = vrot.lane.b32.xlu0 %v547, 8
        %v619 = vpop.permute.xlu0 %618
        %620 = vrot.lane.b32.xlu0 %v548, 8
        %v621 = vpop.permute.xlu0 %620
        %622 = vrot.lane.b32.xlu0 %v549, 8
        %v623 = vpop.permute.xlu0 %622
        %624 = vrot.lane.b32.xlu0 %v550, 8
        %v625 = vpop.permute.xlu0 %624
        %626 = vrot.lane.b32.xlu0 %v551, 8
        %v627 = vpop.permute.xlu0 %626
        %628 = vrot.lane.b32.xlu0 %v552, 8
        %v629 = vpop.permute.xlu0 %628
        %630 = vrot.lane.b32.xlu0 %v553, 8
        %v631 = vpop.permute.xlu0 %630
        %632 = vrot.lane.b32.xlu0 %v554, 8
        %v633 = vpop.permute.xlu0 %632
        %634 = vrot.lane.b32.xlu0 %v555, 8
        %v635 = vpop.permute.xlu0 %634
        %vm636 = vcmask 31744
        %v639 = vsel %vm636, %v473, %v557
        %v642 = vsel %vm636, %v474, %v559
        %v645 = vsel %vm636, %v475, %v561
        %v648 = vsel %vm636, %v476, %v563
        %v651 = vsel %vm636, %v477, %v565
        %v654 = vsel %vm636, %v478, %v567
        %v657 = vsel %vm636, %v479, %v569
        %v660 = vsel %vm636, %v480, %v571
        %v663 = vsel %vm636, %v481, %v573
        %v666 = vsel %vm636, %v482, %v575
        %v669 = vsel %vm636, %v483, %v577
        %v672 = vsel %vm636, %v484, %v579
        %v675 = vsel %vm636, %v485, %v581
        %v678 = vsel %vm636, %v486, %v583
        %v681 = vsel %vm636, %v487, %v585
        %v684 = vsel %vm636, %v488, %v587
        %vm685 = vcmask 64512
        %v687 = vsel %vm685, %v639, %v605
        %v689 = vsel %vm685, %v642, %v607
        %v691 = vsel %vm685, %v645, %v609
        %v693 = vsel %vm685, %v648, %v611
        %v695 = vsel %vm685, %v651, %v613
        %v697 = vsel %vm685, %v654, %v615
        %v699 = vsel %vm685, %v657, %v617
        %v701 = vsel %vm685, %v660, %v619
        %v703 = vsel %vm685, %v663, %v621
        %v705 = vsel %vm685, %v666, %v623
        %v707 = vsel %vm685, %v669, %v625
        %v709 = vsel %vm685, %v672, %v627
        %v711 = vsel %vm685, %v675, %v629
        %v713 = vsel %vm685, %v678, %v631
        %v715 = vsel %vm685, %v681, %v633
        %v717 = vsel %vm685, %v684, %v635
        %734 = vrot.lane.b32.xlu0 %v687, 12
        %v735 = vpop.permute.xlu0 %734
        %736 = vrot.lane.b32.xlu0 %v689, 12
        %v737 = vpop.permute.xlu0 %736
        %738 = vrot.lane.b32.xlu0 %v691, 12
        %v739 = vpop.permute.xlu0 %738
        %740 = vrot.lane.b32.xlu0 %v693, 12
        %v741 = vpop.permute.xlu0 %740
        %742 = vrot.lane.b32.xlu0 %v695, 12
        %v743 = vpop.permute.xlu0 %742
        %744 = vrot.lane.b32.xlu0 %v697, 12
        %v745 = vpop.permute.xlu0 %744
        %746 = vrot.lane.b32.xlu0 %v699, 12
        %v747 = vpop.permute.xlu0 %746
        %748 = vrot.lane.b32.xlu0 %v701, 12
        %v749 = vpop.permute.xlu0 %748
        %750 = vrot.lane.b32.xlu0 %v703, 12
        %v751 = vpop.permute.xlu0 %750
        %752 = vrot.lane.b32.xlu0 %v705, 12
        %v753 = vpop.permute.xlu0 %752
        %754 = vrot.lane.b32.xlu0 %v707, 12
        %v755 = vpop.permute.xlu0 %754
        %756 = vrot.lane.b32.xlu0 %v709, 12
        %v757 = vpop.permute.xlu0 %756
        %758 = vrot.lane.b32.xlu0 %v711, 12
        %v759 = vpop.permute.xlu0 %758
        %760 = vrot.lane.b32.xlu0 %v713, 12
        %v761 = vpop.permute.xlu0 %760
        %762 = vrot.lane.b32.xlu0 %v715, 12
        %v763 = vpop.permute.xlu0 %762
        %764 = vrot.lane.b32.xlu0 %v717, 12
        %v765 = vpop.permute.xlu0 %764
        %767 = vrot.lane.b32.xlu0 %v689, 24
        %v768 = vpop.permute.xlu0 %767
        %769 = vrot.lane.b32.xlu0 %v691, 24
        %v770 = vpop.permute.xlu0 %769
        %771 = vrot.lane.b32.xlu0 %v693, 24
        %v772 = vpop.permute.xlu0 %771
        %773 = vrot.lane.b32.xlu0 %v695, 24
        %v774 = vpop.permute.xlu0 %773
        %775 = vrot.lane.b32.xlu0 %v697, 24
        %v776 = vpop.permute.xlu0 %775
        %777 = vrot.lane.b32.xlu0 %v699, 24
        %v778 = vpop.permute.xlu0 %777
        %779 = vrot.lane.b32.xlu0 %v701, 24
        %v780 = vpop.permute.xlu0 %779
        %781 = vrot.lane.b32.xlu0 %v703, 24
        %v782 = vpop.permute.xlu0 %781
        %783 = vrot.lane.b32.xlu0 %v705, 24
        %v784 = vpop.permute.xlu0 %783
        %785 = vrot.lane.b32.xlu0 %v707, 24
        %v786 = vpop.permute.xlu0 %785
        %787 = vrot.lane.b32.xlu0 %v709, 24
        %v788 = vpop.permute.xlu0 %787
        %789 = vrot.lane.b32.xlu0 %v711, 24
        %v790 = vpop.permute.xlu0 %789
        %791 = vrot.lane.b32.xlu0 %v713, 24
        %v792 = vpop.permute.xlu0 %791
        %793 = vrot.lane.b32.xlu0 %v715, 24
        %v794 = vpop.permute.xlu0 %793
        %795 = vrot.lane.b32.xlu0 %v717, 24
        %v796 = vpop.permute.xlu0 %795
        %797 = vrot.lane.b32.xlu0 0, 24
        %v798 = vpop.permute.xlu0 %797
        %vm799 = vcmask 97280
        %v802 = vsel %vm799, 0, %v735
        %v804 = vsel %vm799, %v687, %v737
        %v806 = vsel %vm799, %v689, %v739
        %v808 = vsel %vm799, %v691, %v741
        %v810 = vsel %vm799, %v693, %v743
        %v812 = vsel %vm799, %v695, %v745
        %v814 = vsel %vm799, %v697, %v747
        %v816 = vsel %vm799, %v699, %v749
        %v818 = vsel %vm799, %v701, %v751
        %v820 = vsel %vm799, %v703, %v753
        %v822 = vsel %vm799, %v705, %v755
        %v824 = vsel %vm799, %v707, %v757
        %v826 = vsel %vm799, %v709, %v759
        %v828 = vsel %vm799, %v711, %v761
        %v830 = vsel %vm799, %v713, %v763
        %v832 = vsel %vm799, %v715, %v765
        %vm833 = vcmask 195584
        %v835 = vsel %vm833, %v802, %v768
        %v837 = vsel %vm833, %v804, %v770
        %v839 = vsel %vm833, %v806, %v772
        %v841 = vsel %vm833, %v808, %v774
        %v843 = vsel %vm833, %v810, %v776
        %v845 = vsel %vm833, %v812, %v778
        %v847 = vsel %vm833, %v814, %v780
        %v849 = vsel %vm833, %v816, %v782
        %v851 = vsel %vm833, %v818, %v784
        %v853 = vsel %vm833, %v820, %v786
        %v855 = vsel %vm833, %v822, %v788
        %v857 = vsel %vm833, %v824, %v790
        %v859 = vsel %vm833, %v826, %v792
        %v861 = vsel %vm833, %v828, %v794
        %v863 = vsel %vm833, %v830, %v796
        %v865 = vsel %vm833, %v832, %v798
        %v882 = vunpack.c.l.b16 %v835
        %v883 = vunpack.c.h.b16 %v835
        %v884 = vunpack.c.l.b16 %v837
        %v885 = vunpack.c.h.b16 %v837
        %v886 = vunpack.c.l.b16 %v839
        %v887 = vunpack.c.h.b16 %v839
        %v888 = vunpack.c.l.b16 %v841
        %v889 = vunpack.c.h.b16 %v841
        %v890 = vunpack.c.l.b16 %v843
        %v891 = vunpack.c.h.b16 %v843
        %v892 = vunpack.c.l.b16 %v845
        %v893 = vunpack.c.h.b16 %v845
        %v894 = vunpack.c.l.b16 %v847
        %v895 = vunpack.c.h.b16 %v847
        %v896 = vunpack.c.l.b16 %v849
        %v897 = vunpack.c.h.b16 %v849
        %v898 = vunpack.c.l.b16 %v851
        %v899 = vunpack.c.h.b16 %v851
        %v900 = vunpack.c.l.b16 %v853
        %v901 = vunpack.c.h.b16 %v853
        %v902 = vunpack.c.l.b16 %v855
        %v903 = vunpack.c.h.b16 %v855
        %v904 = vunpack.c.l.b16 %v857
        %v905 = vunpack.c.h.b16 %v857
        %v906 = vunpack.c.l.b16 %v859
        %v907 = vunpack.c.h.b16 %v859
        %v908 = vunpack.c.l.b16 %v861
        %v909 = vunpack.c.h.b16 %v861
        %v910 = vunpack.c.l.b16 %v863
        %v911 = vunpack.c.h.b16 %v863
        %v912 = vunpack.c.l.b16 %v865
        %v913 = vunpack.c.h.b16 %v865
        %v914 = vpack.c.b16 %v882, %v882
        %v915 = vpack.c.b16 %v883, %v883
        %v916 = vpack.c.b16 %v884, %v884
        %v917 = vpack.c.b16 %v885, %v885
        %v918 = vpack.c.b16 %v886, %v886
        %v919 = vpack.c.b16 %v887, %v887
        %v920 = vpack.c.b16 %v888, %v888
        %v921 = vpack.c.b16 %v889, %v889
        %v922 = vpack.c.b16 %v890, %v890
        %v923 = vpack.c.b16 %v891, %v891
        %v924 = vpack.c.b16 %v892, %v892
        %v925 = vpack.c.b16 %v893, %v893
        %v926 = vpack.c.b16 %v894, %v894
        %v927 = vpack.c.b16 %v895, %v895
        %v928 = vpack.c.b16 %v896, %v896
        %v929 = vpack.c.b16 %v897, %v897
        %v930 = vpack.c.b16 %v898, %v898
        %v931 = vpack.c.b16 %v899, %v899
        %v932 = vpack.c.b16 %v900, %v900
        %v933 = vpack.c.b16 %v901, %v901
        %v934 = vpack.c.b16 %v902, %v902
        %v935 = vpack.c.b16 %v903, %v903
        %v936 = vpack.c.b16 %v904, %v904
        %v937 = vpack.c.b16 %v905, %v905
        %v938 = vpack.c.b16 %v906, %v906
        %v939 = vpack.c.b16 %v907, %v907
        %v940 = vpack.c.b16 %v908, %v908
        %v941 = vpack.c.b16 %v909, %v909
        %v942 = vpack.c.b16 %v910, %v910
        %v943 = vpack.c.b16 %v911, %v911
        %v944 = vpack.c.b16 %v912, %v912
        %v945 = vpack.c.b16 %v913, %v913
        %vm978 = vcmask 289792
        %979 = vst.msk [vmem:[#allocation2] sm:$0xf] %vm978, %v914
        %980 = vst.msk [vmem:[#allocation2 + $0x4] sm:$0xf] %vm978, %v915
        %981 = vst.msk [vmem:[#allocation2 + $0x8] sm:$0xf] %vm978, %v916
        %982 = vst.msk [vmem:[#allocation2 + $0xc] sm:$0xf] %vm978, %v917
        %983 = vst.msk [vmem:[#allocation2 + $0x10] sm:$0xf] %vm978, %v918
        %984 = vst.msk [vmem:[#allocation2 + $0x14] sm:$0xf] %vm978, %v919
        %985 = vst.msk [vmem:[#allocation2 + $0x18] sm:$0xf] %vm978, %v920
        %986 = vst.msk [vmem:[#allocation2 + $0x1c] sm:$0xf] %vm978, %v921
        %987 = vst.msk [vmem:[#allocation2 + $0x20] sm:$0xf] %vm978, %v922
        %988 = vst.msk [vmem:[#allocation2 + $0x24] sm:$0xf] %vm978, %v923
        %989 = vst.msk [vmem:[#allocation2 + $0x28] sm:$0xf] %vm978, %v924
        %990 = vst.msk [vmem:[#allocation2 + $0x2c] sm:$0xf] %vm978, %v925
        %991 = vst.msk [vmem:[#allocation2 + $0x30] sm:$0xf] %vm978, %v926
        %992 = vst.msk [vmem:[#allocation2 + $0x34] sm:$0xf] %vm978, %v927
        %993 = vst.msk [vmem:[#allocation2 + $0x38] sm:$0xf] %vm978, %v928
        %994 = vst.msk [vmem:[#allocation2 + $0x3c] sm:$0xf] %vm978, %v929
        %995 = vst.msk [vmem:[#allocation2 + $0x40] sm:$0xf] %vm978, %v930
        %996 = vst.msk [vmem:[#allocation2 + $0x44] sm:$0xf] %vm978, %v931
        %997 = vst.msk [vmem:[#allocation2 + $0x48] sm:$0xf] %vm978, %v932
        %998 = vst.msk [vmem:[#allocation2 + $0x4c] sm:$0xf] %vm978, %v933
        %999 = vst.msk [vmem:[#allocation2 + $0x50] sm:$0xf] %vm978, %v934
        %1000 = vst.msk [vmem:[#allocation2 + $0x54] sm:$0xf] %vm978, %v935
        %1001 = vst.msk [vmem:[#allocation2 + $0x58] sm:$0xf] %vm978, %v936
        %1002 = vst.msk [vmem:[#allocation2 + $0x5c] sm:$0xf] %vm978, %v937
        %1003 = vst.msk [vmem:[#allocation2 + $0x60] sm:$0xf] %vm978, %v938
        %1004 = vst.msk [vmem:[#allocation2 + $0x64] sm:$0xf] %vm978, %v939
        %1005 = vst.msk [vmem:[#allocation2 + $0x68] sm:$0xf] %vm978, %v940
        %1006 = vst.msk [vmem:[#allocation2 + $0x6c] sm:$0xf] %vm978, %v941
        %1007 = vst.msk [vmem:[#allocation2 + $0x70] sm:$0xf] %vm978, %v942
        %1008 = vst.msk [vmem:[#allocation2 + $0x74] sm:$0xf] %vm978, %v943
        %1009 = vst.msk [vmem:[#allocation2 + $0x78] sm:$0xf] %vm978, %v944
        %1010 = vst.msk [vmem:[#allocation2 + $0x7c] sm:$0xf] %vm978, %v945
      $region36: #{tpu_custom_call.1} parent=31 // pred_fallthru
        _
      %v1011 = vld [vmem:[#allocation2] sm:$0xf]
      %v1012 = vld [vmem:[#allocation2 + $0x4] sm:$0xf]
      %v1013 = vld [vmem:[#allocation2 + $0x8] sm:$0xf]
      %v1014 = vld [vmem:[#allocation2 + $0xc] sm:$0xf]
      %v1015 = vld [vmem:[#allocation2 + $0x10] sm:$0xf]
      %v1016 = vld [vmem:[#allocation2 + $0x14] sm:$0xf]
      %v1017 = vld [vmem:[#allocation2 + $0x18] sm:$0xf]
      %v1018 = vld [vmem:[#allocation2 + $0x1c] sm:$0xf]
      %v1019 = vld [vmem:[#allocation2 + $0x20] sm:$0xf]
      %v1020 = vld [vmem:[#allocation2 + $0x24] sm:$0xf]
      %v1021 = vld [vmem:[#allocation2 + $0x28] sm:$0xf]
      %v1022 = vld [vmem:[#allocation2 + $0x2c] sm:$0xf]
      %v1023 = vld [vmem:[#allocation2 + $0x30] sm:$0xf]
      %v1024 = vld [vmem:[#allocation2 + $0x34] sm:$0xf]
      %v1025 = vld [vmem:[#allocation2 + $0x38] sm:$0xf]
      %v1026 = vld [vmem:[#allocation2 + $0x3c] sm:$0xf]
      %v1027 = vld [vmem:[#allocation2 + $0x40] sm:$0xf]
      %v1028 = vld [vmem:[#allocation2 + $0x44] sm:$0xf]
      %v1029 = vld [vmem:[#allocation2 + $0x48] sm:$0xf]
      %v1030 = vld [vmem:[#allocation2 + $0x4c] sm:$0xf]
      %v1031 = vld [vmem:[#allocation2 + $0x50] sm:$0xf]
      %v1032 = vld [vmem:[#allocation2 + $0x54] sm:$0xf]
      %v1033 = vld [vmem:[#allocation2 + $0x58] sm:$0xf]
      %v1034 = vld [vmem:[#allocation2 + $0x5c] sm:$0xf]
      %v1035 = vld [vmem:[#allocation2 + $0x60] sm:$0xf]
      %v1036 = vld [vmem:[#allocation2 + $0x64] sm:$0xf]
      %v1037 = vld [vmem:[#allocation2 + $0x68] sm:$0xf]
      %v1038 = vld [vmem:[#allocation2 + $0x6c] sm:$0xf]
      %v1039 = vld [vmem:[#allocation2 + $0x70] sm:$0xf]
      %v1040 = vld [vmem:[#allocation2 + $0x74] sm:$0xf]
      %v1041 = vld [vmem:[#allocation2 + $0x78] sm:$0xf]
      %v1042 = vld [vmem:[#allocation2 + $0x7c] sm:$0xf]
      %v1043 = vld [vmem:[%s212] sm:$0xf]
      %v1044 = vld [vmem:[%s212 + $0x4] sm:$0xf]
      %v1045 = vld [vmem:[%s212 + $0x8] sm:$0xf]
      %v1046 = vld [vmem:[%s212 + $0xc] sm:$0xf]
      %v1047 = vld [vmem:[%s212 + $0x10] sm:$0x3]
      %v1080 = vunpack.c.l.b16 %v1011
      %v1081 = vunpack.c.l.b16 %v1012
      %v1082 = vunpack.c.l.b16 %v1013
      %v1083 = vunpack.c.l.b16 %v1014
      %v1084 = vunpack.c.l.b16 %v1015
      %v1085 = vunpack.c.l.b16 %v1016
      %v1086 = vunpack.c.l.b16 %v1017
      %v1087 = vunpack.c.l.b16 %v1018
      %v1088 = vunpack.c.l.b16 %v1019
      %v1089 = vunpack.c.l.b16 %v1020
      %v1090 = vunpack.c.l.b16 %v1021
      %v1091 = vunpack.c.l.b16 %v1022
      %v1092 = vunpack.c.l.b16 %v1023
      %v1093 = vunpack.c.l.b16 %v1024
      %v1094 = vunpack.c.l.b16 %v1025
      %v1095 = vunpack.c.l.b16 %v1026
      %v1096 = vunpack.c.l.b16 %v1027
      %v1097 = vunpack.c.l.b16 %v1028
      %v1098 = vunpack.c.l.b16 %v1029
      %v1099 = vunpack.c.l.b16 %v1030
      %v1100 = vunpack.c.l.b16 %v1031
      %v1101 = vunpack.c.l.b16 %v1032
      %v1102 = vunpack.c.l.b16 %v1033
      %v1103 = vunpack.c.l.b16 %v1034
      %v1104 = vunpack.c.l.b16 %v1035
      %v1105 = vunpack.c.l.b16 %v1036
      %v1106 = vunpack.c.l.b16 %v1037
      %v1107 = vunpack.c.l.b16 %v1038
      %v1108 = vunpack.c.l.b16 %v1039
      %v1109 = vunpack.c.l.b16 %v1040
      %v1110 = vunpack.c.l.b16 %v1041
      %v1111 = vunpack.c.l.b16 %v1042
      %v1112 = vpack.c.b16 %v1081, %v1080
      %v1113 = vpack.c.b16 %v1083, %v1082
      %v1114 = vpack.c.b16 %v1085, %v1084
      %v1115 = vpack.c.b16 %v1087, %v1086
      %v1116 = vpack.c.b16 %v1089, %v1088
      %v1117 = vpack.c.b16 %v1091, %v1090
      %v1118 = vpack.c.b16 %v1093, %v1092
      %v1119 = vpack.c.b16 %v1095, %v1094
      %v1120 = vpack.c.b16 %v1097, %v1096
      %v1121 = vpack.c.b16 %v1099, %v1098
      %v1122 = vpack.c.b16 %v1101, %v1100
      %v1123 = vpack.c.b16 %v1103, %v1102
      %v1124 = vpack.c.b16 %v1105, %v1104
      %v1125 = vpack.c.b16 %v1107, %v1106
      %v1126 = vpack.c.b16 %v1109, %v1108
      %v1127 = vpack.c.b16 %v1111, %v1110
      %v1133 = vunpack.c.l.b16 %v1043
      %v1134 = vunpack.c.l.b16 %v1044
      %v1135 = vunpack.c.l.b16 %v1045
      %v1136 = vunpack.c.l.b16 %v1046
      %v1137 = vunpack.c.l.b16 %v1047
      %v1138 = vpack.c.b16 %v1134, %v1133
      %v1139 = vpack.c.b16 %v1136, %v1135
      %v1140 = vpack.c.b16 %v1137, %v1137
      %vm1143 = vcmask 293888
      %v1145 = vsel %vm1143, %v1112, 0
      %v1148 = vsel %vm1143, %v1113, 0
      %v1151 = vsel %vm1143, %v1114, 0
      %v1154 = vsel %vm1143, %v1115, 0
      %v1157 = vsel %vm1143, %v1116, 0
      %v1160 = vsel %vm1143, %v1117, 0
      %v1163 = vsel %vm1143, %v1118, 0
      %v1166 = vsel %vm1143, %v1119, 0
      %v1169 = vsel %vm1143, %v1120, 0
      %v1172 = vsel %vm1143, %v1121, 0
      %v1175 = vsel %vm1143, %v1122, 0
      %v1178 = vsel %vm1143, %v1123, 0
      %v1181 = vsel %vm1143, %v1124, 0
      %v1184 = vsel %vm1143, %v1125, 0
      %v1187 = vsel %vm1143, %v1126, 0
      %v1190 = vsel %vm1143, %v1127, 0
      %vm1192 = vcmask 1041408
      %v1194 = vsel %vm1192, %v1140, 0
      %1196 = vmatprep.subr.bf16.mxu0 0
      %1197 = vmatpush1.bf16.msra.mxu0 0
      %1198 = vmatprep.subr.bf16.mxu0 0
      %1199 = vmatpush1.bf16.msra.mxu0 0
      %1200 = vmatprep.subr.bf16.mxu0 0
      %1201 = vmatpush1.bf16.msra.mxu0 0
      %1202 = vmatprep.subr.bf16.mxu0 0
      %1203 = vmatpush1.bf16.msra.mxu0 0
      %1204 = vmatprep.subr.bf16.mxu0 0
      %1205 = vmatpush1.bf16.msra.mxu0 0
      %1206 = vmatprep.subr.bf16.mxu0 0
      %1207 = vmatpush1.bf16.msra.mxu0 %v1194
      %1208 = vmatprep.subr.bf16.mxu0 0
      %1209 = vmatpush1.bf16.msra.mxu0 %v1139
      %1210 = vmatprep.subr.bf16.mxu0 0
      %1211 = vmatpush1.bf16.msra.mxu0 %v1138
      %1212 = vmatprep.subr.bf16.mxu0 0
      %1213 = vmatpush2.bf16.msra.mxu0 0
      %1214 = vmatprep.subr.bf16.mxu0 0
      %1215 = vmatpush2.bf16.msra.mxu0 0
      %1216 = vmatprep.subr.bf16.mxu0 0
      %1217 = vmatpush2.bf16.msra.mxu0 0
      %1218 = vmatprep.subr.bf16.mxu0 0
      %1219 = vmatpush2.bf16.msra.mxu0 0
      %1220 = vmatprep.subr.bf16.mxu0 0
      %1221 = vmatpush2.bf16.msra.mxu0 0
      %1222 = vmatprep.subr.bf16.mxu0 0
      %1223 = vmatpush2.bf16.msra.mxu0 0
      %1224 = vmatprep.subr.bf16.mxu0 0
      %1225 = vmatpush2.bf16.msra.mxu0 0
      %1226 = vmatprep.subr.bf16.mxu0 0
      %1227 = vmatpush2.bf16.msra.mxu0 0
      %1228 = vmatprep.mubr.bf16.mxu0 0
      %1229 = vmatmul.mubr.bf16.gmra.mxu0 %v1145
      %v1230 = vpop.f32.mrf.mxu0
      %v1231 = vadd.f32 0.0, %v1230
      %v1232 = vpop.f32.mrf.mxu0
      %v1233 = vpop.f32.mrf.mxu0
      %v1234 = vadd.f32 0.0, %v1233
      %v1235 = vpop.f32.mrf.mxu0
      %1236 = vmatprep.mubr.bf16.mxu0 0
      %1237 = vmatmul.mubr.bf16.gmra.mxu0 %v1148
      %v1238 = vpop.f32.mrf.mxu0
      %v1239 = vadd.f32 0.0, %v1238
      %v1240 = vpop.f32.mrf.mxu0
      %v1241 = vpop.f32.mrf.mxu0
      %v1242 = vadd.f32 0.0, %v1241
      %v1243 = vpop.f32.mrf.mxu0
      %1244 = vmatprep.mubr.bf16.mxu0 0
      %1245 = vmatmul.mubr.bf16.gmra.mxu0 %v1151
      %v1246 = vpop.f32.mrf.mxu0
      %v1247 = vadd.f32 0.0, %v1246
      %v1248 = vpop.f32.mrf.mxu0
      %v1249 = vpop.f32.mrf.mxu0
      %v1250 = vadd.f32 0.0, %v1249
      %v1251 = vpop.f32.mrf.mxu0
      %1252 = vmatprep.mubr.bf16.mxu0 0
      %1253 = vmatmul.mubr.bf16.gmra.mxu0 %v1154
      %v1254 = vpop.f32.mrf.mxu0
      %v1255 = vadd.f32 0.0, %v1254
      %v1256 = vpop.f32.mrf.mxu0
      %v1257 = vpop.f32.mrf.mxu0
      %v1258 = vadd.f32 0.0, %v1257
      %v1259 = vpop.f32.mrf.mxu0
      %1260 = vmatprep.mubr.bf16.mxu0 0
      %1261 = vmatmul.mubr.bf16.gmra.mxu0 %v1157
      %v1262 = vpop.f32.mrf.mxu0
      %v1263 = vadd.f32 0.0, %v1262
      %v1264 = vpop.f32.mrf.mxu0
      %v1265 = vpop.f32.mrf.mxu0
      %v1266 = vadd.f32 0.0, %v1265
      %v1267 = vpop.f32.mrf.mxu0
      %1268 = vmatprep.mubr.bf16.mxu0 0
      %1269 = vmatmul.mubr.bf16.gmra.mxu0 %v1160
      %v1270 = vpop.f32.mrf.mxu0
      %v1271 = vadd.f32 0.0, %v1270
      %v1272 = vpop.f32.mrf.mxu0
      %v1273 = vpop.f32.mrf.mxu0
      %v1274 = vadd.f32 0.0, %v1273
      %v1275 = vpop.f32.mrf.mxu0
      %1276 = vmatprep.mubr.bf16.mxu0 0
      %1277 = vmatmul.mubr.bf16.gmra.mxu0 %v1163
      %v1278 = vpop.f32.mrf.mxu0
      %v1279 = vadd.f32 0.0, %v1278
      %v1280 = vpop.f32.mrf.mxu0
      %v1281 = vpop.f32.mrf.mxu0
      %v1282 = vadd.f32 0.0, %v1281
      %v1283 = vpop.f32.mrf.mxu0
      %1284 = vmatprep.mubr.bf16.mxu0 0
      %1285 = vmatmul.mubr.bf16.gmra.mxu0 %v1166
      %v1286 = vpop.f32.mrf.mxu0
      %v1287 = vadd.f32 0.0, %v1286
      %v1288 = vpop.f32.mrf.mxu0
      %v1289 = vpop.f32.mrf.mxu0
      %v1290 = vadd.f32 0.0, %v1289
      %v1291 = vpop.f32.mrf.mxu0
      %1292 = vmatprep.mubr.bf16.mxu0 0
      %1293 = vmatmul.mubr.bf16.gmra.mxu0 %v1169
      %v1294 = vpop.f32.mrf.mxu0
      %v1295 = vadd.f32 0.0, %v1294
      %v1296 = vpop.f32.mrf.mxu0
      %v1297 = vpop.f32.mrf.mxu0
      %v1298 = vadd.f32 0.0, %v1297
      %v1299 = vpop.f32.mrf.mxu0
      %1300 = vmatprep.mubr.bf16.mxu0 0
      %1301 = vmatmul.mubr.bf16.gmra.mxu0 %v1172
      %v1302 = vpop.f32.mrf.mxu0
      %v1303 = vadd.f32 0.0, %v1302
      %v1304 = vpop.f32.mrf.mxu0
      %v1305 = vpop.f32.mrf.mxu0
      %v1306 = vadd.f32 0.0, %v1305
      %v1307 = vpop.f32.mrf.mxu0
      %1308 = vmatprep.mubr.bf16.mxu0 0
      %1309 = vmatmul.mubr.bf16.gmra.mxu0 %v1175
      %v1310 = vpop.f32.mrf.mxu0
      %v1311 = vadd.f32 0.0, %v1310
      %v1312 = vpop.f32.mrf.mxu0
      %v1313 = vpop.f32.mrf.mxu0
      %v1314 = vadd.f32 0.0, %v1313
      %v1315 = vpop.f32.mrf.mxu0
      %1316 = vmatprep.mubr.bf16.mxu0 0
      %1317 = vmatmul.mubr.bf16.gmra.mxu0 %v1178
      %v1318 = vpop.f32.mrf.mxu0
      %v1319 = vadd.f32 0.0, %v1318
      %v1320 = vpop.f32.mrf.mxu0
      %v1321 = vpop.f32.mrf.mxu0
      %v1322 = vadd.f32 0.0, %v1321
      %v1323 = vpop.f32.mrf.mxu0
      %1324 = vmatprep.mubr.bf16.mxu0 0
      %1325 = vmatmul.mubr.bf16.gmra.mxu0 %v1181
      %v1326 = vpop.f32.mrf.mxu0
      %v1327 = vadd.f32 0.0, %v1326
      %v1328 = vpop.f32.mrf.mxu0
      %v1329 = vpop.f32.mrf.mxu0
      %v1330 = vadd.f32 0.0, %v1329
      %v1331 = vpop.f32.mrf.mxu0
      %1332 = vmatprep.mubr.bf16.mxu0 0
      %1333 = vmatmul.mubr.bf16.gmra.mxu0 %v1184
      %v1334 = vpop.f32.mrf.mxu0
      %v1335 = vadd.f32 0.0, %v1334
      %v1336 = vpop.f32.mrf.mxu0
      %v1337 = vpop.f32.mrf.mxu0
      %v1338 = vadd.f32 0.0, %v1337
      %v1339 = vpop.f32.mrf.mxu0
      %1340 = vmatprep.mubr.bf16.mxu0 0
      %1341 = vmatmul.mubr.bf16.gmra.mxu0 %v1187
      %v1342 = vpop.f32.mrf.mxu0
      %v1343 = vadd.f32 0.0, %v1342
      %v1344 = vpop.f32.mrf.mxu0
      %v1345 = vpop.f32.mrf.mxu0
      %v1346 = vadd.f32 0.0, %v1345
      %v1347 = vpop.f32.mrf.mxu0
      %1348 = vmatprep.mubr.bf16.mxu0 0
      %1349 = vmatmul.mubr.bf16.gmra.mxu0 %v1190
      %v1350 = vpop.f32.mrf.mxu0
      %v1351 = vadd.f32 0.0, %v1350
      %v1352 = vpop.f32.mrf.mxu0
      %v1353 = vpop.f32.mrf.mxu0
      %v1354 = vadd.f32 0.0, %v1353
      %v1355 = vpop.f32.mrf.mxu0
      %1356 = vdwg.mxu0
      %v1357 = vadd.f32 %v1231, %v1234
      %v1358 = vadd.f32 %v1357, %v1239
      %v1359 = vadd.f32 %v1358, %v1242
      %v1360 = vadd.f32 %v1359, %v1247
      %v1361 = vadd.f32 %v1360, %v1250
      %v1362 = vadd.f32 %v1361, %v1255
      %v1363 = vadd.f32 %v1362, %v1258
      %v1364 = vadd.f32 %v1363, %v1263
      %v1365 = vadd.f32 %v1364, %v1266
      %v1366 = vadd.f32 %v1365, %v1271
      %v1367 = vadd.f32 %v1366, %v1274
      %v1368 = vadd.f32 %v1367, %v1279
      %v1369 = vadd.f32 %v1368, %v1282
      %v1370 = vadd.f32 %v1369, %v1287
      %v1371 = vadd.f32 %v1370, %v1290
      %v1372 = vadd.f32 %v1371, %v1295
      %v1373 = vadd.f32 %v1372, %v1298
      %v1374 = vadd.f32 %v1373, %v1303
      %v1375 = vadd.f32 %v1374, %v1306
      %v1376 = vadd.f32 %v1375, %v1311
      %v1377 = vadd.f32 %v1376, %v1314
      %v1378 = vadd.f32 %v1377, %v1319
      %v1379 = vadd.f32 %v1378, %v1322
      %v1380 = vadd.f32 %v1379, %v1327
      %v1381 = vadd.f32 %v1380, %v1330
      %v1382 = vadd.f32 %v1381, %v1335
      %v1383 = vadd.f32 %v1382, %v1338
      %v1384 = vadd.f32 %v1383, %v1343
      %v1385 = vadd.f32 %v1384, %v1346
      %v1386 = vadd.f32 %v1385, %v1351
      %v1387 = vadd.f32 %v1386, %v1354
      %v1388 = vrot.slane %v1387, 4
      %v1389 = vadd.f32 %v1387, %v1388
      %v1390 = vrot.slane %v1389, 2
      %v1391 = vadd.f32 %v1389, %v1390
      %v1392 = vrot.slane %v1391, 1
      %v1393 = vadd.f32 %v1391, %v1392
      %v1394 = vmul.f32 %v1393, 0.00390625
      %v1395 = vsub.f32 %v1231, %v1394
      %v1396 = vsub.f32 %v1234, %v1394
      %v1397 = vsub.f32 %v1239, %v1394
      %v1398 = vsub.f32 %v1242, %v1394
      %v1399 = vsub.f32 %v1247, %v1394
      %v1400 = vsub.f32 %v1250, %v1394
      %v1401 = vsub.f32 %v1255, %v1394
      %v1402 = vsub.f32 %v1258, %v1394
      %v1403 = vsub.f32 %v1263, %v1394
      %v1404 = vsub.f32 %v1266, %v1394
      %v1405 = vsub.f32 %v1271, %v1394
      %v1406 = vsub.f32 %v1274, %v1394
      %v1407 = vsub.f32 %v1279, %v1394
      %v1408 = vsub.f32 %v1282, %v1394
      %v1409 = vsub.f32 %v1287, %v1394
      %v1410 = vsub.f32 %v1290, %v1394
      %v1411 = vsub.f32 %v1295, %v1394
      %v1412 = vsub.f32 %v1298, %v1394
      %v1413 = vsub.f32 %v1303, %v1394
      %v1414 = vsub.f32 %v1306, %v1394
      %v1415 = vsub.f32 %v1311, %v1394
      %v1416 = vsub.f32 %v1314, %v1394
      %v1417 = vsub.f32 %v1319, %v1394
      %v1418 = vsub.f32 %v1322, %v1394
      %v1419 = vsub.f32 %v1327, %v1394
      %v1420 = vsub.f32 %v1330, %v1394
      %v1421 = vsub.f32 %v1335, %v1394
      %v1422 = vsub.f32 %v1338, %v1394
      %v1423 = vsub.f32 %v1343, %v1394
      %v1424 = vsub.f32 %v1346, %v1394
      %v1425 = vsub.f32 %v1351, %v1394
      %v1426 = vsub.f32 %v1354, %v1394
      %v1427 = vmul.f32 %v1395, %v1395
      %v1428 = vmul.f32 %v1396, %v1396
      %v1429 = vmul.f32 %v1397, %v1397
      %v1430 = vmul.f32 %v1398, %v1398
      %v1431 = vmul.f32 %v1399, %v1399
      %v1432 = vmul.f32 %v1400, %v1400
      %v1433 = vmul.f32 %v1401, %v1401
      %v1434 = vmul.f32 %v1402, %v1402
      %v1435 = vmul.f32 %v1403, %v1403
      %v1436 = vmul.f32 %v1404, %v1404
      %v1437 = vmul.f32 %v1405, %v1405
      %v1438 = vmul.f32 %v1406, %v1406
      %v1439 = vmul.f32 %v1407, %v1407
      %v1440 = vmul.f32 %v1408, %v1408
      %v1441 = vmul.f32 %v1409, %v1409
      %v1442 = vmul.f32 %v1410, %v1410
      %v1443 = vmul.f32 %v1411, %v1411
      %v1444 = vmul.f32 %v1412, %v1412
      %v1445 = vmul.f32 %v1413, %v1413
      %v1446 = vmul.f32 %v1414, %v1414
      %v1447 = vmul.f32 %v1415, %v1415
      %v1448 = vmul.f32 %v1416, %v1416
      %v1449 = vmul.f32 %v1417, %v1417
      %v1450 = vmul.f32 %v1418, %v1418
      %v1451 = vmul.f32 %v1419, %v1419
      %v1452 = vmul.f32 %v1420, %v1420
      %v1453 = vmul.f32 %v1421, %v1421
      %v1454 = vmul.f32 %v1422, %v1422
      %v1455 = vmul.f32 %v1423, %v1423
      %v1456 = vmul.f32 %v1424, %v1424
      %v1457 = vmul.f32 %v1425, %v1425
      %v1458 = vmul.f32 %v1426, %v1426
      %v1459 = vadd.f32 %v1427, %v1428
      %v1460 = vadd.f32 %v1459, %v1429
      %v1461 = vadd.f32 %v1460, %v1430
      %v1462 = vadd.f32 %v1461, %v1431
      %v1463 = vadd.f32 %v1462, %v1432
      %v1464 = vadd.f32 %v1463, %v1433
      %v1465 = vadd.f32 %v1464, %v1434
      %v1466 = vadd.f32 %v1465, %v1435
      %v1467 = vadd.f32 %v1466, %v1436
      %v1468 = vadd.f32 %v1467, %v1437
      %v1469 = vadd.f32 %v1468, %v1438
      %v1470 = vadd.f32 %v1469, %v1439
      %v1471 = vadd.f32 %v1470, %v1440
      %v1472 = vadd.f32 %v1471, %v1441
      %v1473 = vadd.f32 %v1472, %v1442
      %v1474 = vadd.f32 %v1473, %v1443
      %v1475 = vadd.f32 %v1474, %v1444
      %v1476 = vadd.f32 %v1475, %v1445
      %v1477 = vadd.f32 %v1476, %v1446
      %v1478 = vadd.f32 %v1477, %v1447
      %v1479 = vadd.f32 %v1478, %v1448
      %v1480 = vadd.f32 %v1479, %v1449
      %v1481 = vadd.f32 %v1480, %v1450
      %v1482 = vadd.f32 %v1481, %v1451
      %v1483 = vadd.f32 %v1482, %v1452
      %v1484 = vadd.f32 %v1483, %v1453
      %v1485 = vadd.f32 %v1484, %v1454
      %v1486 = vadd.f32 %v1485, %v1455
      %v1487 = vadd.f32 %v1486, %v1456
      %v1488 = vadd.f32 %v1487, %v1457
      %v1489 = vadd.f32 %v1488, %v1458
      %v1490 = vrot.slane %v1489, 4
      %v1491 = vadd.f32 %v1489, %v1490
      %v1492 = vrot.slane %v1491, 2
      %v1493 = vadd.f32 %v1491, %v1492
      %v1494 = vrot.slane %v1493, 1
      %v1495 = vadd.f32 %v1493, %v1494
      %v1496 = vmul.f32 %v1495, 0.00390625
      %v1497 = vld [vmem:[%s216] sm:$0x1]
      %v1498 = vld [vmem:[%s216 + $0x1] sm:$0x1]
      %v1499 = vadd.f32 %v1496, 1e-05
      %v1500 = vrsqrt.pop %v1499
      %v1501 = vmul.f32 %v1500, %v1497
      %v1502 = vlaneseq
      %v1503 = vshrl.u32 %v1502, 7
      %v1504 = vsub.s32 0, %v1503
      %v1505 = vrot.slane %v1501, %v1504
      %v1506 = vmul.f32 %v1395, %v1505
      %v1507 = vmul.f32 %v1396, %v1505
      %v1508 = vmul.f32 %v1397, %v1505
      %v1509 = vmul.f32 %v1398, %v1505
      %v1510 = vmul.f32 %v1399, %v1505
      %v1511 = vmul.f32 %v1400, %v1505
      %v1512 = vmul.f32 %v1401, %v1505
      %v1513 = vmul.f32 %v1402, %v1505
      %v1514 = vmul.f32 %v1403, %v1505
      %v1515 = vmul.f32 %v1404, %v1505
      %v1516 = vmul.f32 %v1405, %v1505
      %v1517 = vmul.f32 %v1406, %v1505
      %v1518 = vmul.f32 %v1407, %v1505
      %v1519 = vmul.f32 %v1408, %v1505
      %v1520 = vmul.f32 %v1409, %v1505
      %v1521 = vmul.f32 %v1410, %v1505
      %v1522 = vmul.f32 %v1411, %v1505
      %v1523 = vmul.f32 %v1412, %v1505
      %v1524 = vmul.f32 %v1413, %v1505
      %v1525 = vmul.f32 %v1414, %v1505
      %v1526 = vmul.f32 %v1415, %v1505
      %v1527 = vmul.f32 %v1416, %v1505
      %v1528 = vmul.f32 %v1417, %v1505
      %v1529 = vmul.f32 %v1418, %v1505
      %v1530 = vmul.f32 %v1419, %v1505
      %v1531 = vmul.f32 %v1420, %v1505
      %v1532 = vmul.f32 %v1421, %v1505
      %v1533 = vmul.f32 %v1422, %v1505
      %v1534 = vmul.f32 %v1423, %v1505
      %v1535 = vmul.f32 %v1424, %v1505
      %v1536 = vmul.f32 %v1425, %v1505
      %v1537 = vmul.f32 %v1426, %v1505
      %v1538 = vlaneseq
      %v1539 = vshrl.u32 %v1538, 7
      %v1540 = vsub.s32 0, %v1539
      %v1541 = vrot.slane %v1498, %v1540
      %v1542 = vadd.f32 %v1506, %v1541
      %v1543 = vadd.f32 %v1507, %v1541
      %v1544 = vadd.f32 %v1508, %v1541
      %v1545 = vadd.f32 %v1509, %v1541
      %v1546 = vadd.f32 %v1510, %v1541
      %v1547 = vadd.f32 %v1511, %v1541
      %v1548 = vadd.f32 %v1512, %v1541
      %v1549 = vadd.f32 %v1513, %v1541
      %v1550 = vadd.f32 %v1514, %v1541
      %v1551 = vadd.f32 %v1515, %v1541
      %v1552 = vadd.f32 %v1516, %v1541
      %v1553 = vadd.f32 %v1517, %v1541
      %v1554 = vadd.f32 %v1518, %v1541
      %v1555 = vadd.f32 %v1519, %v1541
      %v1556 = vadd.f32 %v1520, %v1541
      %v1557 = vadd.f32 %v1521, %v1541
      %v1558 = vadd.f32 %v1522, %v1541
      %v1559 = vadd.f32 %v1523, %v1541
      %v1560 = vadd.f32 %v1524, %v1541
      %v1561 = vadd.f32 %v1525, %v1541
      %v1562 = vadd.f32 %v1526, %v1541
      %v1563 = vadd.f32 %v1527, %v1541
      %v1564 = vadd.f32 %v1528, %v1541
      %v1565 = vadd.f32 %v1529, %v1541
      %v1566 = vadd.f32 %v1530, %v1541
      %v1567 = vadd.f32 %v1531, %v1541
      %v1568 = vadd.f32 %v1532, %v1541
      %v1569 = vadd.f32 %v1533, %v1541
      %v1570 = vadd.f32 %v1534, %v1541
      %v1571 = vadd.f32 %v1535, %v1541
      %v1572 = vadd.f32 %v1536, %v1541
      %v1573 = vadd.f32 %v1537, %v1541
      %v1574 = vmax.f32 %v1542, 0.0
      %v1575 = vmax.f32 %v1543, 0.0
      %v1576 = vmax.f32 %v1544, 0.0
      %v1577 = vmax.f32 %v1545, 0.0
      %v1578 = vmax.f32 %v1546, 0.0
      %v1579 = vmax.f32 %v1547, 0.0
      %v1580 = vmax.f32 %v1548, 0.0
      %v1581 = vmax.f32 %v1549, 0.0
      %v1582 = vmax.f32 %v1550, 0.0
      %v1583 = vmax.f32 %v1551, 0.0
      %v1584 = vmax.f32 %v1552, 0.0
      %v1585 = vmax.f32 %v1553, 0.0
      %v1586 = vmax.f32 %v1554, 0.0
      %v1587 = vmax.f32 %v1555, 0.0
      %v1588 = vmax.f32 %v1556, 0.0
      %v1589 = vmax.f32 %v1557, 0.0
      %v1590 = vmax.f32 %v1558, 0.0
      %v1591 = vmax.f32 %v1559, 0.0
      %v1592 = vmax.f32 %v1560, 0.0
      %v1593 = vmax.f32 %v1561, 0.0
      %v1594 = vmax.f32 %v1562, 0.0
      %v1595 = vmax.f32 %v1563, 0.0
      %v1596 = vmax.f32 %v1564, 0.0
      %v1597 = vmax.f32 %v1565, 0.0
      %v1598 = vmax.f32 %v1566, 0.0
      %v1599 = vmax.f32 %v1567, 0.0
      %v1600 = vmax.f32 %v1568, 0.0
      %v1601 = vmax.f32 %v1569, 0.0
      %v1602 = vmax.f32 %v1570, 0.0
      %v1603 = vmax.f32 %v1571, 0.0
      %v1604 = vmax.f32 %v1572, 0.0
      %v1605 = vmax.f32 %v1573, 0.0
      %vm1606 = vcmask 64512
      %1607 = vst.msk [vmem:[%s224] sm:$0xff] %vm1606, %v1574
      %1608 = vst.msk [vmem:[%s224 + $0x8] sm:$0xff] %vm1606, %v1575
      %1609 = vst.msk [vmem:[%s224 + $0x10] sm:$0xff] %vm1606, %v1576
      %1610 = vst.msk [vmem:[%s224 + $0x18] sm:$0xff] %vm1606, %v1577
      %1611 = vst.msk [vmem:[%s224 + $0x20] sm:$0xff] %vm1606, %v1578
      %1612 = vst.msk [vmem:[%s224 + $0x28] sm:$0xff] %vm1606, %v1579
      %1613 = vst.msk [vmem:[%s224 + $0x30] sm:$0xff] %vm1606, %v1580
      %1614 = vst.msk [vmem:[%s224 + $0x38] sm:$0xff] %vm1606, %v1581
      %1615 = vst.msk [vmem:[%s224 + $0x40] sm:$0xff] %vm1606, %v1582
      %1616 = vst.msk [vmem:[%s224 + $0x48] sm:$0xff] %vm1606, %v1583
      %1617 = vst.msk [vmem:[%s224 + $0x50] sm:$0xff] %vm1606, %v1584
      %1618 = vst.msk [vmem:[%s224 + $0x58] sm:$0xff] %vm1606, %v1585
      %1619 = vst.msk [vmem:[%s224 + $0x60] sm:$0xff] %vm1606, %v1586
      %1620 = vst.msk [vmem:[%s224 + $0x68] sm:$0xff] %vm1606, %v1587
      %1621 = vst.msk [vmem:[%s224 + $0x70] sm:$0xff] %vm1606, %v1588
      %1622 = vst.msk [vmem:[%s224 + $0x78] sm:$0xff] %vm1606, %v1589
      %1623 = vst.msk [vmem:[%s224 + $0x80] sm:$0xff] %vm1606, %v1590
      %1624 = vst.msk [vmem:[%s224 + $0x88] sm:$0xff] %vm1606, %v1591
      %1625 = vst.msk [vmem:[%s224 + $0x90] sm:$0xff] %vm1606, %v1592
      %1626 = vst.msk [vmem:[%s224 + $0x98] sm:$0xff] %vm1606, %v1593
      %1627 = vst.msk [vmem:[%s224 + $0xa0] sm:$0xff] %vm1606, %v1594
      %1628 = vst.msk [vmem:[%s224 + $0xa8] sm:$0xff] %vm1606, %v1595
      %1629 = vst.msk [vmem:[%s224 + $0xb0] sm:$0xff] %vm1606, %v1596
      %1630 = vst.msk [vmem:[%s224 + $0xb8] sm:$0xff] %vm1606, %v1597
      %1631 = vst.msk [vmem:[%s224 + $0xc0] sm:$0xff] %vm1606, %v1598
      %1632 = vst.msk [vmem:[%s224 + $0xc8] sm:$0xff] %vm1606, %v1599
      %1633 = vst.msk [vmem:[%s224 + $0xd0] sm:$0xff] %vm1606, %v1600
      %1634 = vst.msk [vmem:[%s224 + $0xd8] sm:$0xff] %vm1606, %v1601
      %1635 = vst.msk [vmem:[%s224 + $0xe0] sm:$0xff] %vm1606, %v1602
      %1636 = vst.msk [vmem:[%s224 + $0xe8] sm:$0xff] %vm1606, %v1603
      %1637 = vst.msk [vmem:[%s224 + $0xf0] sm:$0xff] %vm1606, %v1604
      %1638 = vst.msk [vmem:[%s224 + $0xf8] sm:$0xff] %vm1606, %v1605
      %p1639 = scmp.lt.s32.totalorder %s18, 1
      %s1640 = scalar_select %p1639, %s18, 1
      %p1641 = scmp.lt.s32.totalorder %s19, 0
      %s1642 = scalar_select %p1641, %s19, 0
      %s1643 = smul.addr %s1640, 32
      %s1644 = sadd.s32 %s1642, %s1643
      %s1645 = smul.addr %s1644, 8
      %s1646 = scalar_lea.vmem %s3, %s1645
      // Predicated region
      $region37: #{tpu_custom_call.1} parent=31 // pred_check
        %p1647 = pneg %p124
      $region38: #{tpu_custom_call.1} parent=31 // pred_check_branch
        %1649 = sbr.rel (%p1647) target = $region40
      $region39: #{tpu_custom_call.1} parent=31 // pred_region
        _
      $region40: #{tpu_custom_call.1} parent=31 // pred_fallthru
        _
    $region32: #{tpu_custom_call.1} parent=5 // pred_fallthru
      _
    %p1650 = scmp.le.s32.totalorder 2, %s9
    // Predicated region
    $region41: #{tpu_custom_call.1} parent=5 // pred_check
      %p1651 = pneg %p1650
    $region42: #{tpu_custom_call.1} parent=5 // pred_check_branch
      %1653 = sbr.rel (%p1651) target = $region44
    $region43: #{tpu_custom_call.1} parent=5 // pred_region
      %s1654 = ssub.s32 %s9, 2
      // Predicated region
      $region45: #{tpu_custom_call.1} parent=43 // pred_check
        %p1655 = pneg %p130
      $region46: #{tpu_custom_call.1} parent=43 // pred_check_branch
        %1657 = sbr.rel (%p1655) target = $region48
      $region47: #{tpu_custom_call.1} parent=43 // pred_region
        %p1658 = scmp.lt.s32.totalorder %s20, 1
        %s1659 = scalar_select %p1658, %s20, 1
        %p1660 = scmp.lt.s32.totalorder %s21, 0
        %s1661 = scalar_select %p1660, %s21, 0
        %s1662 = smul.addr %s1659, 32
        %s1663 = sadd.s32 %s1661, %s1662
        %s1664 = smul.addr %s1663, 8
        %s1665 = scalar_lea.vmem %s3, %s1664
      $region48: #{tpu_custom_call.1} parent=43 // pred_fallthru
        _
    $region44: #{tpu_custom_call.1} parent=5 // pred_fallthru
      _
  $region6: #{tpu_custom_call.1} parent=0 // loop_footer
    %s13 = sadd.s32 1, %s9
  $region7: #{tpu_custom_call.1} parent=0 // loop_footer_branch
    %8 = sbr.rel target = $region3
  $region8: #{tpu_custom_call.1} parent=0 // loop_exit
    _

</llo_original>
